<compile_context>
chip_gen: v5e
topology: v5e:2x2
jax: 0.10.0
libtpu: 0.0.40
codegen_flags: <defaults>
</compile_context>

<pallas_src>
import functools

import jax
import jax.numpy as jnp
from jax.experimental import pallas as pl
from jax.experimental.pallas import tpu as pltpu

EMSIZE = 32      # args.emsize
NFILT = 128      # conv output channels
NBINS = 11       # args.nbins
NBINS_PAD = 128  # lane-dense per-pair output width (sliced back to NBINS in wrapper)
MU = (1.0, 0.9, 0.7, 0.5, 0.3, 0.1, -0.1, -0.3, -0.5, -0.7, -0.9)
SIGMA = (1e-3,) + (0.1,) * 10

# Execution order of the 9 (q_width, d_width) pairs, grouped by q width for
# BlockSpec DMA reuse, with d ordered 0,1,2 / 2,1,0 / 0,1,2 for boundary reuse.
Q_EXEC = (0, 0, 0, 1, 1, 1, 2, 2, 2)
D_EXEC = (0, 1, 2, 2, 1, 0, 0, 1, 2)
# Canonical torch.cat order is [uu, ut, ub, bu, tu, bb, bt, tb, tt]; OUT_SLOT maps
# each execution step to its canonical output slot (a permutation, applied via the
# scalar-prefetched output index_map).
OUT_SLOT = (0, 2, 1, 6, 5, 3, 4, 7, 8)
# Canonical (q_width, d_width) pairs, used only by the plain-JAX self-check.
CANONICAL_PAIRS = ((0, 0), (0, 2), (0, 1), (1, 0), (2, 0), (1, 1), (1, 2), (2, 1), (2, 2))


def _exp_dtype():
    """bf16 exp runs ~2x on the v6e/v7x EUP; chips <= v5 lack bf16 EUP -> keep f32."""
    try:
        kind = jax.devices()[0].device_kind.lower()
    except Exception:
        return jnp.float32
    if any(v in kind for v in ("v2", "v3", "v4", "v5")):
        return jnp.float32
    return jnp.bfloat16


# ----------------------------------------------------------------------------
# Kernel 1: fused 3-width conv + bias + ReLU + 1e-9 + rsqrt L2-normalize
# ----------------------------------------------------------------------------
def conv_feat_kernel(u_ref, w_ref, b_ref, o_ref):
    u = u_ref[...]                                   # (R, 3E) bf16 unfolded embeddings
    for g in range(3):                               # widths 1,2,3; w rows >= (g+1)*E are 0
        acc = jnp.dot(u, w_ref[g], preferred_element_type=jnp.float32)  # single K=3E MXU matmul
        y = jnp.maximum(acc + b_ref[g], 0.0) + 1e-9                     # bias + ReLU + ref eps
        inv = jax.lax.rsqrt(
            jnp.maximum(jnp.sum(y * y, axis=-1, keepdims=True), 1e-20))  # == 1/max(||y||,1e-10)
        o_ref[g] = (y * inv).astype(o_ref.dtype)     # dense (R, 128) bf16 store


def conv_features(emb, w_packed, b_packed, *, row_tile=None):
    """emb: (B, L, E) f32 -> (3, B*L, NFILT) bf16 L2-normalized n-gram features.

    Rows i with (i mod L) > L - k are junk for width k; the intersect kernel masks
    them (it has to mask regardless, since exp of a zero similarity is nonzero).
    """
    B, L, E = emb.shape
    # Wrapper-side unfold to a lane-dense (B*L, 3E) slab: layout plumbing only, and
    # it lets the kernel do one K=3E matmul per width with M = B*L (batch folded).
    x = jnp.pad(emb, ((0, 0), (0, 2), (0, 0)))
    u = jnp.concatenate([x[:, t:t + L, :] for t in range(3)], axis=-1)
    u = u.reshape(B * L, 3 * E).astype(jnp.bfloat16)

    rows = B * L
    if row_tile is None:
        row_tile = rows      # demo scale; for large B*L pick a multiple of 512
    return pl.pallas_call(
        conv_feat_kernel,
        out_shape=jax.ShapeDtypeStruct((3, rows, NFILT), jnp.bfloat16),
        grid=(pl.cdiv(rows, row_tile),),
        in_specs=[
            pl.BlockSpec((row_tile, 3 * E), lambda i: (i, 0)),
            pl.BlockSpec((3, 3 * E, NFILT), lambda i: (0, 0, 0)),   # weight slab stays resident
            pl.BlockSpec((3, 1, NFILT), lambda i: (0, 0, 0)),
        ],
        out_specs=pl.BlockSpec((3, row_tile, NFILT), lambda i: (0, i, 0)),
        compiler_params=pltpu.CompilerParams(
            dimension_semantics=("parallel",)),
    )(u, w_packed, b_packed)


# ----------------------------------------------------------------------------
# Kernel 2: all 9 get_intersect_matrix calls fused into one grid=(9, Ld_tiles) call
# ----------------------------------------------------------------------------
def intersect_kernel(qidx_ref, didx_ref, oslot_ref, q_ref, d_ref, o_ref, acc_ref,
                     *, lq, ld, ld_tile, mu, sigma, exp_dtype):
    del oslot_ref                      # used only by the output index_map
    p = pl.program_id(0)
    l = pl.program_id(1)

    @pl.when(l == 0)
    def _():
        acc_ref[...] = jnp.zeros_like(acc_ref)

    q = q_ref[0]                       # (B, Lq, C) bf16, L2-normalized
    d = d_ref[0]                       # (B, TL, C) bf16, L2-normalized
    b = q.shape[0]

    # sim = torch.bmm(q, d^T): bf16 operands on the MXU, f32 accumulation.
    sim = jnp.einsum("bqc,bdc->bqd", q, d, preferred_element_type=jnp.float32)

    # Doc-padding mask applied ONCE as a finite sentinel: every bin's
    # exp(-(sim-mu)^2/(2 sigma^2)) underflows to exactly 0 at sim = -1e4.
    n_valid_d = ld - didx_ref[p]
    d_pos = l * ld_tile + jax.lax.broadcasted_iota(jnp.int32, (1, 1, ld_tile), 2)
    sim = jnp.where(d_pos < n_valid_d, sim, -1e4)

    # Per-bin pooling sums accumulated across Ld tiles (f32 accumulation).
    for j in range(len(mu)):
        z = -((sim - mu[j]) ** 2) * (0.5 / sigma[j] ** 2)
        e = jnp.exp(z.astype(exp_dtype))                # bf16 EUP on v6e/v7x, f32 on <= v5
        acc_ref[j] = acc_ref[j] + jnp.sum(e, axis=2, dtype=jnp.float32)   # (B, Lq)

    @pl.when(l == pl.num_programs(1) - 1)
    def _():
        n_valid_q = lq - qidx_ref[p]
        q_mask = (jax.lax.broadcasted_iota(jnp.int32, (1, lq), 1)
                  < n_valid_q).astype(jnp.float32)
        lane = jax.lax.broadcasted_iota(jnp.int32, (b, NBINS_PAD), 1)
        out = jnp.zeros((b, NBINS_PAD), jnp.float32)
        for j in range(len(mu)):
            log_ps = jnp.log(jnp.maximum(acc_ref[j], 1e-10)) * 0.01 * q_mask
            col = jnp.sum(log_ps, axis=1, keepdims=True)            # (B, 1)
            out = jnp.where(lane == j, col, out)
        o_ref[0] = out                                              # lane-dense (B, 128) store


def intersect_all(qfeat, dfeat, *, ld_tile=None):
    """qfeat: (3, B, Lq, C), dfeat: (3, B, Ld, C) bf16 -> (9, B, NBINS) f32 in the
    canonical torch.cat order [uu, ut, ub, bu, tu, bb, bt, tb, tt]."""
    _, B, Lq, C = qfeat.shape
    Ld = dfeat.shape[2]
    if ld_tile is None:
        # Demo: one tile.  Production (esp. v7x, 64 MiB VMEM): pick the largest
        # multiple of 128 s.t. double-buffered d tiles + the f32 sim tile + the q
        # slab stay under ~half the scoped VMEM, and raise vmem_limit_bytes in
        # pltpu.CompilerParams.
        ld_tile = Ld
    n_ld = pl.cdiv(Ld, ld_tile)

    qidx = jnp.asarray(Q_EXEC, jnp.int32)
    didx = jnp.asarray(D_EXEC, jnp.int32)
    oslot = jnp.asarray(OUT_SLOT, jnp.int32)

    kern = functools.partial(
        intersect_kernel, lq=Lq, ld=Ld, ld_tile=ld_tile,
        mu=MU, sigma=SIGMA, exp_dtype=_exp_dtype())

    out = pl.pallas_call(
        kern,
        out_shape=jax.ShapeDtypeStruct((9, B, NBINS_PAD), jnp.float32),
        grid_spec=pltpu.PrefetchScalarGridSpec(
            num_scalar_prefetch=3,
            grid=(9, n_ld),
            in_specs=[
                pl.BlockSpec((1, B, Lq, C),
                             lambda p, l, qi, di, os: (qi[p], 0, 0, 0)),
                pl.BlockSpec((1, B, ld_tile, C),
                             lambda p, l, qi, di, os: (di[p], 0, l, 0)),
            ],
            out_specs=pl.BlockSpec((1, B, NBINS_PAD),
                                   lambda p, l, qi, di, os: (os[p], 0, 0)),
            scratch_shapes=[pltpu.VMEM((NBINS, B, Lq), jnp.float32)],
        ),
        compiler_params=pltpu.CompilerParams(
            dimension_semantics=("parallel", "arbitrary")),
    )(qidx, didx, oslot, qfeat, dfeat)
    return out[:, :, :NBINS]


# ----------------------------------------------------------------------------
# Plain-JAX glue: parameter init, weight packing (hoisted out of the forward),
# embedding lookup, forward
# ----------------------------------------------------------------------------
def init_params(key, vocab):
    ks = jax.random.split(key, 7)
    params = {"emb": jax.random.normal(ks[0], (vocab, EMSIZE), jnp.float32) * 0.1}
    for i, k in enumerate((1, 2, 3), start=1):
        params[f"w{k}"] = (
            jax.random.normal(ks[2 * i - 1], (k * EMSIZE, NFILT), jnp.float32) * 0.05)
        params[f"b{k}"] = (
            jax.random.normal(ks[2 * i], (1, NFILT), jnp.float32) * 0.05)
    return params


def pack_weights(params):
    """Stack the three conv weights/biases into zero-padded (3, 3E, C) bf16 / (3, 1, C) f32.

    Hoisted out of the forward so the scatter .at[].set packing and the bf16 cast
    are not on the per-call critical path."""
    w = jnp.zeros((3, 3 * EMSIZE, NFILT), jnp.float32)
    b = jnp.zeros((3, 1, NFILT), jnp.float32)
    for i, k in enumerate((1, 2, 3)):
        w = w.at[i, : k * EMSIZE, :].set(params[f"w{k}"])
        b = b.at[i, 0, :].set(params[f"b{k}"][0])
    return w.astype(jnp.bfloat16), b


def convknrm_forward(batch_queries, batch_docs, batch_semantic, emb_table,
                     w_packed, b_packed):
    # batch_semantic is unused by the reference forward pass.
    del batch_semantic
    # TODO(synk): to_embedding's host-side wv[index_to_word[idx]] string lookup is
    # modeled as a device embedding-table gather.
    emb_q = emb_table[batch_queries]          # (B, Lq, E)
    emb_d = emb_table[batch_docs]             # (B, Ld, E)
    B, Lq, _ = emb_q.shape
    Ld = emb_d.shape[1]

    qfeat = conv_features(emb_q, w_packed, b_packed).reshape(3, B, Lq, NFILT)
    dfeat = conv_features(emb_d, w_packed, b_packed).reshape(3, B, Ld, NFILT)

    out9 = intersect_all(qfeat, dfeat)        # (9, B, NBINS), canonical torch.cat order
    return jnp.transpose(out9, (1, 0, 2)).reshape(B, 9 * NBINS)


# ----------------------------------------------------------------------------
# Plain-JAX f32 reference pieces (self-check only)
# ----------------------------------------------------------------------------
def _conv_norm_ref(x, k, w, b):
    B, L, E = x.shape
    lout = L - k + 1
    u = jnp.concatenate([x[:, t:t + lout, :] for t in range(k)], axis=-1)
    y = jnp.maximum(jnp.einsum("ble,ec->blc", u, w) + b, 0.0) + 1e-9
    n = jnp.sqrt(jnp.sum(y * y, axis=-1, keepdims=True))
    return y / jnp.maximum(n, 1e-10)          # (B, lout, C)


def _intersect_ref(q, d):
    mu = jnp.asarray(MU, jnp.float32)
    sig = jnp.asarray(SIGMA, jnp.float32)
    sim = jnp.einsum("bqc,bdc->bqd", q, d)
    pv = jnp.exp(-((sim[..., None] - mu) ** 2) / (sig ** 2) / 2.0)
    ps = jnp.sum(pv, axis=2)
    lp = jnp.log(jnp.maximum(ps, 1e-10)) * 0.01
    return jnp.sum(lp, axis=1)                # (B, NBINS)


if __name__ == "__main__":
    key = jax.random.PRNGKey(0)
    k_params, k_q, k_d = jax.random.split(key, 3)

    VOCAB = 50
    B, LQ, LD = 2, 8, 12
    params = init_params(k_params, VOCAB)
    batch_queries = jax.random.randint(k_q, (B, LQ), 0, VOCAB, dtype=jnp.int32)
    batch_docs = jax.random.randint(k_d, (B, LD), 0, VOCAB, dtype=jnp.int32)
    batch_semantic = jnp.zeros((B,), jnp.float32)  # unused in forward

    w_packed, b_packed = pack_weights(params)      # hoisted out of the jitted forward
    fwd = jax.jit(convknrm_forward)
    out = fwd(batch_queries, batch_docs, batch_semantic, params["emb"],
              w_packed, b_packed)
    out = jax.block_until_ready(out)
    assert out.shape == (B, 9 * NBINS), out.shape
    assert bool(jnp.all(jnp.isfinite(out)))

    # ---- self-check 1: conv features (valid rows) vs plain-JAX f32 reference ----
    emb_q = params["emb"][batch_queries]
    emb_d = params["emb"][batch_docs]
    qfeat = conv_features(emb_q, w_packed, b_packed).reshape(3, B, LQ, NFILT)
    dfeat = conv_features(emb_d, w_packed, b_packed).reshape(3, B, LD, NFILT)
    for g, k in enumerate((1, 2, 3)):
        rq = _conv_norm_ref(emb_q, k, params[f"w{k}"], params[f"b{k}"])
        rd = _conv_norm_ref(emb_d, k, params[f"w{k}"], params[f"b{k}"])
        dq = float(jnp.max(jnp.abs(qfeat[g, :, :LQ - g, :].astype(jnp.float32) - rq)))
        dd = float(jnp.max(jnp.abs(dfeat[g, :, :LD - g, :].astype(jnp.float32) - rd)))
        assert dq < 5e-2 and dd < 5e-2, (g, dq, dd)

    # ---- self-check 2: fused 9-pair pooling vs f32 reference on the same bf16
    #      features (validates masks, bin math and the output slot permutation) ----
    ref_cols = []
    for a, c in CANONICAL_PAIRS:
        qv = qfeat[a, :, :LQ - a, :].astype(jnp.float32)
        dv = dfeat[c, :, :LD - c, :].astype(jnp.float32)
        ref_cols.append(_intersect_ref(qv, dv))
    ref_out = jnp.concatenate(ref_cols, axis=1)        # (B, 99) canonical order
    diff = float(jnp.max(jnp.abs(out - ref_out)))
    assert diff < 3e-2, diff

    print("KERNEL_OK")
</pallas_src>

<mosaic_0001>
module attributes {stable_mosaic.version = 11 : i64} {
  func.func @conv_feat_kernel(%arg0: i32, %arg1: memref<16x96xbf16, #tpu.memory_space<vmem>>, %arg2: memref<3x96x128xbf16, #tpu.memory_space<vmem>>, %arg3: memref<3x1x128xf32, #tpu.memory_space<vmem>>, %arg4: memref<3x16x128xbf16, #tpu.memory_space<vmem>>) attributes {dimension_semantics = [#tpu.dimension_semantics<parallel>], iteration_bounds = array<i64: 1>, scalar_prefetch = 0 : i64, scratch_operands = 0 : i64, tpu.core_type = #tpu.core_type<tc>, window_params = [{transform_indices = @transform_0, window_bounds = array<i64: 16, 96>}, {pipeline_mode = #tpu.pipeline_mode<synchronous>, transform_indices = @transform_1, window_bounds = array<i64: 3, 96, 128>}, {pipeline_mode = #tpu.pipeline_mode<synchronous>, transform_indices = @transform_2, window_bounds = array<i64: 3, 1, 128>}, {transform_indices = @transform_3, window_bounds = array<i64: 3, 16, 128>}]} {
    %c0 = arith.constant 0 : index
    %c0_0 = arith.constant 0 : index
    %0 = vector.load %arg1[%c0, %c0_0] : memref<16x96xbf16, #tpu.memory_space<vmem>>, vector<16x96xbf16>
    %c0_1 = arith.constant 0 : index
    %c0_2 = arith.constant 0 : index
    %c0_3 = arith.constant 0 : index
    %1 = vector.load %arg2[%c0_1, %c0_2, %c0_3] : memref<3x96x128xbf16, #tpu.memory_space<vmem>>, vector<1x96x128xbf16>
    %2 = vector.shape_cast %1 : vector<1x96x128xbf16> to vector<96x128xbf16>
    %cst = arith.constant dense<0.000000e+00> : vector<16x128xf32>
    %3 = tpu.matmul %0, %2, %cst {dimension_numbers = #tpu.dot_dimension_numbers<[1], [0], [0], [1], [0, 0, 1, 1], [], []>} : vector<16x96xbf16>, vector<96x128xbf16>, vector<16x128xf32> -> vector<16x128xf32>
    %c0_4 = arith.constant 0 : index
    %c0_5 = arith.constant 0 : index
    %c0_6 = arith.constant 0 : index
    %4 = vector.load %arg3[%c0_4, %c0_5, %c0_6] : memref<3x1x128xf32, #tpu.memory_space<vmem>>, vector<1x1x128xf32>
    %5 = vector.shape_cast %4 : vector<1x1x128xf32> to vector<1x128xf32>
    %6 = vector.broadcast %5 : vector<1x128xf32> to vector<16x128xf32>
    %7 = arith.addf %3, %6 : vector<16x128xf32>
    %cst_7 = arith.constant 0.000000e+00 : f32
    %8 = vector.broadcast %cst_7 : f32 to vector<16x128xf32>
    %9 = arith.maximumf %7, %8 : vector<16x128xf32>
    %cst_8 = arith.constant 9.99999971E-10 : f32
    %10 = vector.broadcast %cst_8 : f32 to vector<16x128xf32>
    %11 = arith.addf %9, %10 : vector<16x128xf32>
    %12 = arith.mulf %11, %11 : vector<16x128xf32>
    %cst_9 = arith.constant dense<0.000000e+00> : vector<16xf32>
    %13 = vector.multi_reduction <add>, %12, %cst_9 [1] : vector<16x128xf32> to vector<16xf32>
    %14 = vector.shape_cast %13 : vector<16xf32> to vector<16x1xf32>
    %cst_10 = arith.constant 9.99999968E-21 : f32
    %15 = vector.broadcast %cst_10 : f32 to vector<16x1xf32>
    %16 = arith.maximumf %14, %15 : vector<16x1xf32>
    %17 = math.rsqrt %16 : vector<16x1xf32>
    %18 = vector.broadcast %17 : vector<16x1xf32> to vector<16x128xf32>
    %19 = arith.mulf %11, %18 : vector<16x128xf32>
    %20 = arith.truncf %19 : vector<16x128xf32> to vector<16x128xbf16>
    %c0_11 = arith.constant 0 : index
    %c0_12 = arith.constant 0 : index
    %c0_13 = arith.constant 0 : index
    %21 = vector.load %arg4[%c0_11, %c0_12, %c0_13] : memref<3x16x128xbf16, #tpu.memory_space<vmem>>, vector<1x16x128xbf16>
    %22 = vector.shape_cast %21 : vector<1x16x128xbf16> to vector<16x128xbf16>
    %23 = vector.shape_cast %20 : vector<16x128xbf16> to vector<1x16x128xbf16>
    tpu.vector_store %arg4[%c0_11, %c0_12, %c0_13], %23 {strides = array<i32>} : memref<3x16x128xbf16, #tpu.memory_space<vmem>>, vector<1x16x128xbf16>,
    %c1 = arith.constant 1 : index
    %c0_14 = arith.constant 0 : index
    %c0_15 = arith.constant 0 : index
    %24 = vector.load %arg2[%c1, %c0_14, %c0_15] : memref<3x96x128xbf16, #tpu.memory_space<vmem>>, vector<1x96x128xbf16>
    %25 = vector.shape_cast %24 : vector<1x96x128xbf16> to vector<96x128xbf16>
    %cst_16 = arith.constant dense<0.000000e+00> : vector<16x128xf32>
    %26 = tpu.matmul %0, %25, %cst_16 {dimension_numbers = #tpu.dot_dimension_numbers<[1], [0], [0], [1], [0, 0, 1, 1], [], []>} : vector<16x96xbf16>, vector<96x128xbf16>, vector<16x128xf32> -> vector<16x128xf32>
    %c1_17 = arith.constant 1 : index
    %c0_18 = arith.constant 0 : index
    %c0_19 = arith.constant 0 : index
    %27 = vector.load %arg3[%c1_17, %c0_18, %c0_19] : memref<3x1x128xf32, #tpu.memory_space<vmem>>, vector<1x1x128xf32>
    %28 = vector.shape_cast %27 : vector<1x1x128xf32> to vector<1x128xf32>
    %29 = vector.broadcast %28 : vector<1x128xf32> to vector<16x128xf32>
    %30 = arith.addf %26, %29 : vector<16x128xf32>
    %cst_20 = arith.constant 0.000000e+00 : f32
    %31 = vector.broadcast %cst_20 : f32 to vector<16x128xf32>
    %32 = arith.maximumf %30, %31 : vector<16x128xf32>
    %cst_21 = arith.constant 9.99999971E-10 : f32
    %33 = vector.broadcast %cst_21 : f32 to vector<16x128xf32>
    %34 = arith.addf %32, %33 : vector<16x128xf32>
    %35 = arith.mulf %34, %34 : vector<16x128xf32>
    %cst_22 = arith.constant dense<0.000000e+00> : vector<16xf32>
    %36 = vector.multi_reduction <add>, %35, %cst_22 [1] : vector<16x128xf32> to vector<16xf32>
    %37 = vector.shape_cast %36 : vector<16xf32> to vector<16x1xf32>
    %cst_23 = arith.constant 9.99999968E-21 : f32
    %38 = vector.broadcast %cst_23 : f32 to vector<16x1xf32>
    %39 = arith.maximumf %37, %38 : vector<16x1xf32>
    %40 = math.rsqrt %39 : vector<16x1xf32>
    %41 = vector.broadcast %40 : vector<16x1xf32> to vector<16x128xf32>
    %42 = arith.mulf %34, %41 : vector<16x128xf32>
    %43 = arith.truncf %42 : vector<16x128xf32> to vector<16x128xbf16>
    %c1_24 = arith.constant 1 : index
    %c0_25 = arith.constant 0 : index
    %c0_26 = arith.constant 0 : index
    %44 = vector.load %arg4[%c1_24, %c0_25, %c0_26] : memref<3x16x128xbf16, #tpu.memory_space<vmem>>, vector<1x16x128xbf16>
    %45 = vector.shape_cast %44 : vector<1x16x128xbf16> to vector<16x128xbf16>
    %46 = vector.shape_cast %43 : vector<16x128xbf16> to vector<1x16x128xbf16>
    tpu.vector_store %arg4[%c1_24, %c0_25, %c0_26], %46 {strides = array<i32>} : memref<3x16x128xbf16, #tpu.memory_space<vmem>>, vector<1x16x128xbf16>,
    %c2 = arith.constant 2 : index
    %c0_27 = arith.constant 0 : index
    %c0_28 = arith.constant 0 : index
    %47 = vector.load %arg2[%c2, %c0_27, %c0_28] : memref<3x96x128xbf16, #tpu.memory_space<vmem>>, vector<1x96x128xbf16>
    %48 = vector.shape_cast %47 : vector<1x96x128xbf16> to vector<96x128xbf16>
    %cst_29 = arith.constant dense<0.000000e+00> : vector<16x128xf32>
    %49 = tpu.matmul %0, %48, %cst_29 {dimension_numbers = #tpu.dot_dimension_numbers<[1], [0], [0], [1], [0, 0, 1, 1], [], []>} : vector<16x96xbf16>, vector<96x128xbf16>, vector<16x128xf32> -> vector<16x128xf32>
    %c2_30 = arith.constant 2 : index
    %c0_31 = arith.constant 0 : index
    %c0_32 = arith.constant 0 : index
    %50 = vector.load %arg3[%c2_30, %c0_31, %c0_32] : memref<3x1x128xf32, #tpu.memory_space<vmem>>, vector<1x1x128xf32>
    %51 = vector.shape_cast %50 : vector<1x1x128xf32> to vector<1x128xf32>
    %52 = vector.broadcast %51 : vector<1x128xf32> to vector<16x128xf32>
    %53 = arith.addf %49, %52 : vector<16x128xf32>
    %cst_33 = arith.constant 0.000000e+00 : f32
    %54 = vector.broadcast %cst_33 : f32 to vector<16x128xf32>
    %55 = arith.maximumf %53, %54 : vector<16x128xf32>
    %cst_34 = arith.constant 9.99999971E-10 : f32
    %56 = vector.broadcast %cst_34 : f32 to vector<16x128xf32>
    %57 = arith.addf %55, %56 : vector<16x128xf32>
    %58 = arith.mulf %57, %57 : vector<16x128xf32>
    %cst_35 = arith.constant dense<0.000000e+00> : vector<16xf32>
    %59 = vector.multi_reduction <add>, %58, %cst_35 [1] : vector<16x128xf32> to vector<16xf32>
    %60 = vector.shape_cast %59 : vector<16xf32> to vector<16x1xf32>
    %cst_36 = arith.constant 9.99999968E-21 : f32
    %61 = vector.broadcast %cst_36 : f32 to vector<16x1xf32>
    %62 = arith.maximumf %60, %61 : vector<16x1xf32>
    %63 = math.rsqrt %62 : vector<16x1xf32>
    %64 = vector.broadcast %63 : vector<16x1xf32> to vector<16x128xf32>
    %65 = arith.mulf %57, %64 : vector<16x128xf32>
    %66 = arith.truncf %65 : vector<16x128xf32> to vector<16x128xbf16>
    %c2_37 = arith.constant 2 : index
    %c0_38 = arith.constant 0 : index
    %c0_39 = arith.constant 0 : index
    %67 = vector.load %arg4[%c2_37, %c0_38, %c0_39] : memref<3x16x128xbf16, #tpu.memory_space<vmem>>, vector<1x16x128xbf16>
    %68 = vector.shape_cast %67 : vector<1x16x128xbf16> to vector<16x128xbf16>
    %69 = vector.shape_cast %66 : vector<16x128xbf16> to vector<1x16x128xbf16>
    tpu.vector_store %arg4[%c2_37, %c0_38, %c0_39], %69 {strides = array<i32>} : memref<3x16x128xbf16, #tpu.memory_space<vmem>>, vector<1x16x128xbf16>,
    return
  }
  func.func @transform_0(%arg0: i32) -> (i32, i32) {
    %c0_i32 = arith.constant 0 : i32
    %c0_i32_0 = arith.constant 0 : i32
    return %arg0, %c0_i32 : i32, i32
  }
  func.func @transform_1(%arg0: i32) -> (i32, i32, i32) {
    %c0_i32 = arith.constant 0 : i32
    %c0_i32_0 = arith.constant 0 : i32
    %c0_i32_1 = arith.constant 0 : i32
    %c0_i32_2 = arith.constant 0 : i32
    return %c0_i32, %c0_i32_0, %c0_i32_1 : i32, i32, i32
  }
  func.func @transform_2(%arg0: i32) -> (i32, i32, i32) {
    %c0_i32 = arith.constant 0 : i32
    %c0_i32_0 = arith.constant 0 : i32
    %c0_i32_1 = arith.constant 0 : i32
    %c0_i32_2 = arith.constant 0 : i32
    return %c0_i32, %c0_i32_0, %c0_i32_1 : i32, i32, i32
  }
  func.func @transform_3(%arg0: i32) -> (i32, i32, i32) {
    %c0_i32 = arith.constant 0 : i32
    %c0_i32_0 = arith.constant 0 : i32
    %c0_i32_1 = arith.constant 0 : i32
    return %c0_i32, %arg0, %c0_i32_0 : i32, i32, i32
  }
}

module attributes {stable_mosaic.version = 11 : i64} {
  func.func @conv_feat_kernel(%arg0: i32, %arg1: memref<24x96xbf16, #tpu.memory_space<vmem>>, %arg2: memref<3x96x128xbf16, #tpu.memory_space<vmem>>, %arg3: memref<3x1x128xf32, #tpu.memory_space<vmem>>, %arg4: memref<3x24x128xbf16, #tpu.memory_space<vmem>>) attributes {dimension_semantics = [#tpu.dimension_semantics<parallel>], iteration_bounds = array<i64: 1>, scalar_prefetch = 0 : i64, scratch_operands = 0 : i64, tpu.core_type = #tpu.core_type<tc>, window_params = [{transform_indices = @transform_0, window_bounds = array<i64: 24, 96>}, {pipeline_mode = #tpu.pipeline_mode<synchronous>, transform_indices = @transform_1, window_bounds = array<i64: 3, 96, 128>}, {pipeline_mode = #tpu.pipeline_mode<synchronous>, transform_indices = @transform_2, window_bounds = array<i64: 3, 1, 128>}, {transform_indices = @transform_3, window_bounds = array<i64: 3, 24, 128>}]} {
    %c0 = arith.constant 0 : index
    %c0_0 = arith.constant 0 : index
    %0 = vector.load %arg1[%c0, %c0_0] : memref<24x96xbf16, #tpu.memory_space<vmem>>, vector<24x96xbf16>
    %c0_1 = arith.constant 0 : index
    %c0_2 = arith.constant 0 : index
    %c0_3 = arith.constant 0 : index
    %1 = vector.load %arg2[%c0_1, %c0_2, %c0_3] : memref<3x96x128xbf16, #tpu.memory_space<vmem>>, vector<1x96x128xbf16>
    %2 = vector.shape_cast %1 : vector<1x96x128xbf16> to vector<96x128xbf16>
    %cst = arith.constant dense<0.000000e+00> : vector<24x128xf32>
    %3 = tpu.matmul %0, %2, %cst {dimension_numbers = #tpu.dot_dimension_numbers<[1], [0], [0], [1], [0, 0, 1, 1], [], []>} : vector<24x96xbf16>, vector<96x128xbf16>, vector<24x128xf32> -> vector<24x128xf32>
    %c0_4 = arith.constant 0 : index
    %c0_5 = arith.constant 0 : index
    %c0_6 = arith.constant 0 : index
    %4 = vector.load %arg3[%c0_4, %c0_5, %c0_6] : memref<3x1x128xf32, #tpu.memory_space<vmem>>, vector<1x1x128xf32>
    %5 = vector.shape_cast %4 : vector<1x1x128xf32> to vector<1x128xf32>
    %6 = vector.broadcast %5 : vector<1x128xf32> to vector<24x128xf32>
    %7 = arith.addf %3, %6 : vector<24x128xf32>
    %cst_7 = arith.constant 0.000000e+00 : f32
    %8 = vector.broadcast %cst_7 : f32 to vector<24x128xf32>
    %9 = arith.maximumf %7, %8 : vector<24x128xf32>
    %cst_8 = arith.constant 9.99999971E-10 : f32
    %10 = vector.broadcast %cst_8 : f32 to vector<24x128xf32>
    %11 = arith.addf %9, %10 : vector<24x128xf32>
    %12 = arith.mulf %11, %11 : vector<24x128xf32>
    %cst_9 = arith.constant dense<0.000000e+00> : vector<24xf32>
    %13 = vector.multi_reduction <add>, %12, %cst_9 [1] : vector<24x128xf32> to vector<24xf32>
    %14 = vector.shape_cast %13 : vector<24xf32> to vector<24x1xf32>
    %cst_10 = arith.constant 9.99999968E-21 : f32
    %15 = vector.broadcast %cst_10 : f32 to vector<24x1xf32>
    %16 = arith.maximumf %14, %15 : vector<24x1xf32>
    %17 = math.rsqrt %16 : vector<24x1xf32>
    %18 = vector.broadcast %17 : vector<24x1xf32> to vector<24x128xf32>
    %19 = arith.mulf %11, %18 : vector<24x128xf32>
    %20 = arith.truncf %19 : vector<24x128xf32> to vector<24x128xbf16>
    %c0_11 = arith.constant 0 : index
    %c0_12 = arith.constant 0 : index
    %c0_13 = arith.constant 0 : index
    %21 = vector.load %arg4[%c0_11, %c0_12, %c0_13] : memref<3x24x128xbf16, #tpu.memory_space<vmem>>, vector<1x24x128xbf16>
    %22 = vector.shape_cast %21 : vector<1x24x128xbf16> to vector<24x128xbf16>
    %23 = vector.shape_cast %20 : vector<24x128xbf16> to vector<1x24x128xbf16>
    tpu.vector_store %arg4[%c0_11, %c0_12, %c0_13], %23 {strides = array<i32>} : memref<3x24x128xbf16, #tpu.memory_space<vmem>>, vector<1x24x128xbf16>,
    %c1 = arith.constant 1 : index
    %c0_14 = arith.constant 0 : index
    %c0_15 = arith.constant 0 : index
    %24 = vector.load %arg2[%c1, %c0_14, %c0_15] : memref<3x96x128xbf16, #tpu.memory_space<vmem>>, vector<1x96x128xbf16>
    %25 = vector.shape_cast %24 : vector<1x96x128xbf16> to vector<96x128xbf16>
    %cst_16 = arith.constant dense<0.000000e+00> : vector<24x128xf32>
    %26 = tpu.matmul %0, %25, %cst_16 {dimension_numbers = #tpu.dot_dimension_numbers<[1], [0], [0], [1], [0, 0, 1, 1], [], []>} : vector<24x96xbf16>, vector<96x128xbf16>, vector<24x128xf32> -> vector<24x128xf32>
    %c1_17 = arith.constant 1 : index
    %c0_18 = arith.constant 0 : index
    %c0_19 = arith.constant 0 : index
    %27 = vector.load %arg3[%c1_17, %c0_18, %c0_19] : memref<3x1x128xf32, #tpu.memory_space<vmem>>, vector<1x1x128xf32>
    %28 = vector.shape_cast %27 : vector<1x1x128xf32> to vector<1x128xf32>
    %29 = vector.broadcast %28 : vector<1x128xf32> to vector<24x128xf32>
    %30 = arith.addf %26, %29 : vector<24x128xf32>
    %cst_20 = arith.constant 0.000000e+00 : f32
    %31 = vector.broadcast %cst_20 : f32 to vector<24x128xf32>
    %32 = arith.maximumf %30, %31 : vector<24x128xf32>
    %cst_21 = arith.constant 9.99999971E-10 : f32
    %33 = vector.broadcast %cst_21 : f32 to vector<24x128xf32>
    %34 = arith.addf %32, %33 : vector<24x128xf32>
    %35 = arith.mulf %34, %34 : vector<24x128xf32>
    %cst_22 = arith.constant dense<0.000000e+00> : vector<24xf32>
    %36 = vector.multi_reduction <add>, %35, %cst_22 [1] : vector<24x128xf32> to vector<24xf32>
    %37 = vector.shape_cast %36 : vector<24xf32> to vector<24x1xf32>
    %cst_23 = arith.constant 9.99999968E-21 : f32
    %38 = vector.broadcast %cst_23 : f32 to vector<24x1xf32>
    %39 = arith.maximumf %37, %38 : vector<24x1xf32>
    %40 = math.rsqrt %39 : vector<24x1xf32>
    %41 = vector.broadcast %40 : vector<24x1xf32> to vector<24x128xf32>
    %42 = arith.mulf %34, %41 : vector<24x128xf32>
    %43 = arith.truncf %42 : vector<24x128xf32> to vector<24x128xbf16>
    %c1_24 = arith.constant 1 : index
    %c0_25 = arith.constant 0 : index
    %c0_26 = arith.constant 0 : index
    %44 = vector.load %arg4[%c1_24, %c0_25, %c0_26] : memref<3x24x128xbf16, #tpu.memory_space<vmem>>, vector<1x24x128xbf16>
    %45 = vector.shape_cast %44 : vector<1x24x128xbf16> to vector<24x128xbf16>
    %46 = vector.shape_cast %43 : vector<24x128xbf16> to vector<1x24x128xbf16>
    tpu.vector_store %arg4[%c1_24, %c0_25, %c0_26], %46 {strides = array<i32>} : memref<3x24x128xbf16, #tpu.memory_space<vmem>>, vector<1x24x128xbf16>,
    %c2 = arith.constant 2 : index
    %c0_27 = arith.constant 0 : index
    %c0_28 = arith.constant 0 : index
    %47 = vector.load %arg2[%c2, %c0_27, %c0_28] : memref<3x96x128xbf16, #tpu.memory_space<vmem>>, vector<1x96x128xbf16>
    %48 = vector.shape_cast %47 : vector<1x96x128xbf16> to vector<96x128xbf16>
    %cst_29 = arith.constant dense<0.000000e+00> : vector<24x128xf32>
    %49 = tpu.matmul %0, %48, %cst_29 {dimension_numbers = #tpu.dot_dimension_numbers<[1], [0], [0], [1], [0, 0, 1, 1], [], []>} : vector<24x96xbf16>, vector<96x128xbf16>, vector<24x128xf32> -> vector<24x128xf32>
    %c2_30 = arith.constant 2 : index
    %c0_31 = arith.constant 0 : index
    %c0_32 = arith.constant 0 : index
    %50 = vector.load %arg3[%c2_30, %c0_31, %c0_32] : memref<3x1x128xf32, #tpu.memory_space<vmem>>, vector<1x1x128xf32>
    %51 = vector.shape_cast %50 : vector<1x1x128xf32> to vector<1x128xf32>
    %52 = vector.broadcast %51 : vector<1x128xf32> to vector<24x128xf32>
    %53 = arith.addf %49, %52 : vector<24x128xf32>
    %cst_33 = arith.constant 0.000000e+00 : f32
    %54 = vector.broadcast %cst_33 : f32 to vector<24x128xf32>
    %55 = arith.maximumf %53, %54 : vector<24x128xf32>
    %cst_34 = arith.constant 9.99999971E-10 : f32
    %56 = vector.broadcast %cst_34 : f32 to vector<24x128xf32>
    %57 = arith.addf %55, %56 : vector<24x128xf32>
    %58 = arith.mulf %57, %57 : vector<24x128xf32>
    %cst_35 = arith.constant dense<0.000000e+00> : vector<24xf32>
    %59 = vector.multi_reduction <add>, %58, %cst_35 [1] : vector<24x128xf32> to vector<24xf32>
    %60 = vector.shape_cast %59 : vector<24xf32> to vector<24x1xf32>
    %cst_36 = arith.constant 9.99999968E-21 : f32
    %61 = vector.broadcast %cst_36 : f32 to vector<24x1xf32>
    %62 = arith.maximumf %60, %61 : vector<24x1xf32>
    %63 = math.rsqrt %62 : vector<24x1xf32>
    %64 = vector.broadcast %63 : vector<24x1xf32> to vector<24x128xf32>
    %65 = arith.mulf %57, %64 : vector<24x128xf32>
    %66 = arith.truncf %65 : vector<24x128xf32> to vector<24x128xbf16>
    %c2_37 = arith.constant 2 : index
    %c0_38 = arith.constant 0 : index
    %c0_39 = arith.constant 0 : index
    %67 = vector.load %arg4[%c2_37, %c0_38, %c0_39] : memref<3x24x128xbf16, #tpu.memory_space<vmem>>, vector<1x24x128xbf16>
    %68 = vector.shape_cast %67 : vector<1x24x128xbf16> to vector<24x128xbf16>
    %69 = vector.shape_cast %66 : vector<24x128xbf16> to vector<1x24x128xbf16>
    tpu.vector_store %arg4[%c2_37, %c0_38, %c0_39], %69 {strides = array<i32>} : memref<3x24x128xbf16, #tpu.memory_space<vmem>>, vector<1x24x128xbf16>,
    return
  }
  func.func @transform_0(%arg0: i32) -> (i32, i32) {
    %c0_i32 = arith.constant 0 : i32
    %c0_i32_0 = arith.constant 0 : i32
    return %arg0, %c0_i32 : i32, i32
  }
  func.func @transform_1(%arg0: i32) -> (i32, i32, i32) {
    %c0_i32 = arith.constant 0 : i32
    %c0_i32_0 = arith.constant 0 : i32
    %c0_i32_1 = arith.constant 0 : i32
    %c0_i32_2 = arith.constant 0 : i32
    return %c0_i32, %c0_i32_0, %c0_i32_1 : i32, i32, i32
  }
  func.func @transform_2(%arg0: i32) -> (i32, i32, i32) {
    %c0_i32 = arith.constant 0 : i32
    %c0_i32_0 = arith.constant 0 : i32
    %c0_i32_1 = arith.constant 0 : i32
    %c0_i32_2 = arith.constant 0 : i32
    return %c0_i32, %c0_i32_0, %c0_i32_1 : i32, i32, i32
  }
  func.func @transform_3(%arg0: i32) -> (i32, i32, i32) {
    %c0_i32 = arith.constant 0 : i32
    %c0_i32_0 = arith.constant 0 : i32
    %c0_i32_1 = arith.constant 0 : i32
    return %c0_i32, %arg0, %c0_i32_0 : i32, i32, i32
  }
}

module attributes {stable_mosaic.version = 11 : i64} {
  func.func @intersect_kernel(%arg0: i32, %arg1: i32, %arg2: memref<9xi32, #tpu.memory_space<smem>>, %arg3: memref<9xi32, #tpu.memory_space<smem>>, %arg4: memref<9xi32, #tpu.memory_space<smem>>, %arg5: memref<1x2x8x128xbf16, #tpu.memory_space<vmem>>, %arg6: memref<1x2x12x128xbf16, #tpu.memory_space<vmem>>, %arg7: memref<1x2x128xf32, #tpu.memory_space<vmem>>, %arg8: memref<11x2x8xf32, #tpu.memory_space<vmem>>) attributes {dimension_semantics = [#tpu.dimension_semantics<parallel>, #tpu.dimension_semantics<arbitrary>], iteration_bounds = array<i64: 9, 1>, scalar_prefetch = 3 : i64, scratch_operands = 1 : i64, tpu.core_type = #tpu.core_type<tc>, window_params = [{transform_indices = @transform_0, window_bounds = array<i64: 1, 2, 8, 128>}, {transform_indices = @transform_1, window_bounds = array<i64: 1, 2, 12, 128>}, {transform_indices = @transform_2, window_bounds = array<i64: 1, 2, 128>}]} {
    %c0_i32 = arith.constant 0 : i32
    %0 = arith.cmpi eq, %arg1, %c0_i32 : i32
    %1 = arith.extui %0 : i1 to i32
    %c0_i32_0 = arith.constant 0 : i32
    %2 = arith.cmpi ne, %1, %c0_i32_0 : i32
    scf.if %2 {
      %cst_112 = arith.constant 0.000000e+00 : f32
      %211 = vector.broadcast %cst_112 : f32 to vector<11x2x8xf32>
      %c0_113 = arith.constant 0 : index
      %c0_114 = arith.constant 0 : index
      %c0_115 = arith.constant 0 : index
      %212 = vector.load %arg8[%c0_113, %c0_114, %c0_115] : memref<11x2x8xf32, #tpu.memory_space<vmem>>, vector<11x2x8xf32>
      tpu.vector_store %arg8[%c0_113, %c0_114, %c0_115], %211 {strides = array<i32>} : memref<11x2x8xf32, #tpu.memory_space<vmem>>, vector<11x2x8xf32>,
    } else {
    }
    %c0 = arith.constant 0 : index
    %c0_1 = arith.constant 0 : index
    %c0_2 = arith.constant 0 : index
    %c0_3 = arith.constant 0 : index
    %3 = vector.load %arg5[%c0, %c0_1, %c0_2, %c0_3] : memref<1x2x8x128xbf16, #tpu.memory_space<vmem>>, vector<1x2x8x128xbf16>
    %4 = vector.shape_cast %3 : vector<1x2x8x128xbf16> to vector<2x8x128xbf16>
    %c0_4 = arith.constant 0 : index
    %c0_5 = arith.constant 0 : index
    %c0_6 = arith.constant 0 : index
    %c0_7 = arith.constant 0 : index
    %5 = vector.load %arg6[%c0_4, %c0_5, %c0_6, %c0_7] : memref<1x2x12x128xbf16, #tpu.memory_space<vmem>>, vector<1x2x12x128xbf16>
    %6 = vector.shape_cast %5 : vector<1x2x12x128xbf16> to vector<2x12x128xbf16>
    "tpu.trace_start"() <{level = 10 : i32, message = "bqc,bdc->bqd"}> : () -> ()
    %cst = arith.constant dense<0.000000e+00> : vector<2x8x12xf32>
    %7 = tpu.matmul %4, %6, %cst {dimension_numbers = #tpu.dot_dimension_numbers<[2], [2], [1], [1], [0, 0, 0, 1, 1, 1], [0], [0]>} : vector<2x8x128xbf16>, vector<2x12x128xbf16>, vector<2x8x12xf32> -> vector<2x8x12xf32>
    "tpu.trace_stop"() : () -> ()
    %8 = arith.index_cast %arg0 : i32 to index
    %9 = memref.load %arg3[%8] : memref<9xi32, #tpu.memory_space<smem>>
    %c12_i32 = arith.constant 12 : i32
    %10 = arith.subi %c12_i32, %9 : i32
    %c12_i32_8 = arith.constant 12 : i32
    %11 = arith.muli %arg1, %c12_i32_8 : i32
    %12 = tpu.iota {dimensions = array<i32: 2>} : vector<1x1x12xi32>
    %13 = vector.broadcast %11 : i32 to vector<1x1x12xi32>
    %14 = arith.addi %13, %12 : vector<1x1x12xi32>
    %15 = vector.broadcast %10 : i32 to vector<1x1x12xi32>
    %16 = arith.cmpi slt, %14, %15 : vector<1x1x12xi32>
    %cst_9 = arith.constant -1.000000e+04 : f32
    %17 = vector.shape_cast %16 : vector<1x1x12xi1> to vector<1x1x12xi1>
    %18 = vector.broadcast %17 : vector<1x1x12xi1> to vector<2x8x12xi1>
    %19 = vector.broadcast %cst_9 : f32 to vector<2x8x12xf32>
    %20 = arith.select %18, %7, %19 : vector<2x8x12xi1>, vector<2x8x12xf32>
    %cst_10 = arith.constant 1.000000e+00 : f32
    %21 = vector.broadcast %cst_10 : f32 to vector<2x8x12xf32>
    %22 = arith.subf %20, %21 : vector<2x8x12xf32>
    %23 = arith.mulf %22, %22 : vector<2x8x12xf32>
    %cst_11 = arith.constant 0.000000e+00 : f32
    %24 = vector.broadcast %cst_11 : f32 to vector<2x8x12xf32>
    %25 = arith.subf %24, %23 : vector<2x8x12xf32>
    %cst_12 = arith.constant 5.000000e+05 : f32
    %26 = vector.broadcast %cst_12 : f32 to vector<2x8x12xf32>
    %27 = arith.mulf %25, %26 : vector<2x8x12xf32>
    %28 = arith.truncf %27 : vector<2x8x12xf32> to vector<2x8x12xbf16>
    %29 = math.exp %28 : vector<2x8x12xbf16>
    %c0_13 = arith.constant 0 : index
    %c0_14 = arith.constant 0 : index
    %c0_15 = arith.constant 0 : index
    %30 = vector.load %arg8[%c0_13, %c0_14, %c0_15] : memref<11x2x8xf32, #tpu.memory_space<vmem>>, vector<1x2x8xf32>
    %31 = vector.shape_cast %30 : vector<1x2x8xf32> to vector<2x8xf32>
    %32 = arith.extf %29 : vector<2x8x12xbf16> to vector<2x8x12xf32>
    %cst_16 = arith.constant dense<0.000000e+00> : vector<2x8xf32>
    %33 = vector.multi_reduction <add>, %32, %cst_16 [2] : vector<2x8x12xf32> to vector<2x8xf32>
    %34 = arith.addf %31, %33 : vector<2x8xf32>
    %c0_17 = arith.constant 0 : index
    %c0_18 = arith.constant 0 : index
    %c0_19 = arith.constant 0 : index
    %35 = vector.load %arg8[%c0_17, %c0_18, %c0_19] : memref<11x2x8xf32, #tpu.memory_space<vmem>>, vector<1x2x8xf32>
    %36 = vector.shape_cast %35 : vector<1x2x8xf32> to vector<2x8xf32>
    %37 = vector.shape_cast %34 : vector<2x8xf32> to vector<1x2x8xf32>
    tpu.vector_store %arg8[%c0_17, %c0_18, %c0_19], %37 {strides = array<i32>} : memref<11x2x8xf32, #tpu.memory_space<vmem>>, vector<1x2x8xf32>,
    %cst_20 = arith.constant 0.899999976 : f32
    %38 = vector.broadcast %cst_20 : f32 to vector<2x8x12xf32>
    %39 = arith.subf %20, %38 : vector<2x8x12xf32>
    %40 = arith.mulf %39, %39 : vector<2x8x12xf32>
    %cst_21 = arith.constant 0.000000e+00 : f32
    %41 = vector.broadcast %cst_21 : f32 to vector<2x8x12xf32>
    %42 = arith.subf %41, %40 : vector<2x8x12xf32>
    %cst_22 = arith.constant 5.000000e+01 : f32
    %43 = vector.broadcast %cst_22 : f32 to vector<2x8x12xf32>
    %44 = arith.mulf %42, %43 : vector<2x8x12xf32>
    %45 = arith.truncf %44 : vector<2x8x12xf32> to vector<2x8x12xbf16>
    %46 = math.exp %45 : vector<2x8x12xbf16>
    %c1 = arith.constant 1 : index
    %c0_23 = arith.constant 0 : index
    %c0_24 = arith.constant 0 : index
    %47 = vector.load %arg8[%c1, %c0_23, %c0_24] : memref<11x2x8xf32, #tpu.memory_space<vmem>>, vector<1x2x8xf32>
    %48 = vector.shape_cast %47 : vector<1x2x8xf32> to vector<2x8xf32>
    %49 = arith.extf %46 : vector<2x8x12xbf16> to vector<2x8x12xf32>
    %cst_25 = arith.constant dense<0.000000e+00> : vector<2x8xf32>
    %50 = vector.multi_reduction <add>, %49, %cst_25 [2] : vector<2x8x12xf32> to vector<2x8xf32>
    %51 = arith.addf %48, %50 : vector<2x8xf32>
    %c1_26 = arith.constant 1 : index
    %c0_27 = arith.constant 0 : index
    %c0_28 = arith.constant 0 : index
    %52 = vector.load %arg8[%c1_26, %c0_27, %c0_28] : memref<11x2x8xf32, #tpu.memory_space<vmem>>, vector<1x2x8xf32>
    %53 = vector.shape_cast %52 : vector<1x2x8xf32> to vector<2x8xf32>
    %54 = vector.shape_cast %51 : vector<2x8xf32> to vector<1x2x8xf32>
    tpu.vector_store %arg8[%c1_26, %c0_27, %c0_28], %54 {strides = array<i32>} : memref<11x2x8xf32, #tpu.memory_space<vmem>>, vector<1x2x8xf32>,
    %cst_29 = arith.constant 0.699999988 : f32
    %55 = vector.broadcast %cst_29 : f32 to vector<2x8x12xf32>
    %56 = arith.subf %20, %55 : vector<2x8x12xf32>
    %57 = arith.mulf %56, %56 : vector<2x8x12xf32>
    %cst_30 = arith.constant 0.000000e+00 : f32
    %58 = vector.broadcast %cst_30 : f32 to vector<2x8x12xf32>
    %59 = arith.subf %58, %57 : vector<2x8x12xf32>
    %cst_31 = arith.constant 5.000000e+01 : f32
    %60 = vector.broadcast %cst_31 : f32 to vector<2x8x12xf32>
    %61 = arith.mulf %59, %60 : vector<2x8x12xf32>
    %62 = arith.truncf %61 : vector<2x8x12xf32> to vector<2x8x12xbf16>
    %63 = math.exp %62 : vector<2x8x12xbf16>
    %c2 = arith.constant 2 : index
    %c0_32 = arith.constant 0 : index
    %c0_33 = arith.constant 0 : index
    %64 = vector.load %arg8[%c2, %c0_32, %c0_33] : memref<11x2x8xf32, #tpu.memory_space<vmem>>, vector<1x2x8xf32>
    %65 = vector.shape_cast %64 : vector<1x2x8xf32> to vector<2x8xf32>
    %66 = arith.extf %63 : vector<2x8x12xbf16> to vector<2x8x12xf32>
    %cst_34 = arith.constant dense<0.000000e+00> : vector<2x8xf32>
    %67 = vector.multi_reduction <add>, %66, %cst_34 [2] : vector<2x8x12xf32> to vector<2x8xf32>
    %68 = arith.addf %65, %67 : vector<2x8xf32>
    %c2_35 = arith.constant 2 : index
    %c0_36 = arith.constant 0 : index
    %c0_37 = arith.constant 0 : index
    %69 = vector.load %arg8[%c2_35, %c0_36, %c0_37] : memref<11x2x8xf32, #tpu.memory_space<vmem>>, vector<1x2x8xf32>
    %70 = vector.shape_cast %69 : vector<1x2x8xf32> to vector<2x8xf32>
    %71 = vector.shape_cast %68 : vector<2x8xf32> to vector<1x2x8xf32>
    tpu.vector_store %arg8[%c2_35, %c0_36, %c0_37], %71 {strides = array<i32>} : memref<11x2x8xf32, #tpu.memory_space<vmem>>, vector<1x2x8xf32>,
    %cst_38 = arith.constant 5.000000e-01 : f32
    %72 = vector.broadcast %cst_38 : f32 to vector<2x8x12xf32>
    %73 = arith.subf %20, %72 : vector<2x8x12xf32>
    %74 = arith.mulf %73, %73 : vector<2x8x12xf32>
    %cst_39 = arith.constant 0.000000e+00 : f32
    %75 = vector.broadcast %cst_39 : f32 to vector<2x8x12xf32>
    %76 = arith.subf %75, %74 : vector<2x8x12xf32>
    %cst_40 = arith.constant 5.000000e+01 : f32
    %77 = vector.broadcast %cst_40 : f32 to vector<2x8x12xf32>
    %78 = arith.mulf %76, %77 : vector<2x8x12xf32>
    %79 = arith.truncf %78 : vector<2x8x12xf32> to vector<2x8x12xbf16>
    %80 = math.exp %79 : vector<2x8x12xbf16>
    %c3 = arith.constant 3 : index
    %c0_41 = arith.constant 0 : index
    %c0_42 = arith.constant 0 : index
    %81 = vector.load %arg8[%c3, %c0_41, %c0_42] : memref<11x2x8xf32, #tpu.memory_space<vmem>>, vector<1x2x8xf32>
    %82 = vector.shape_cast %81 : vector<1x2x8xf32> to vector<2x8xf32>
    %83 = arith.extf %80 : vector<2x8x12xbf16> to vector<2x8x12xf32>
    %cst_43 = arith.constant dense<0.000000e+00> : vector<2x8xf32>
    %84 = vector.multi_reduction <add>, %83, %cst_43 [2] : vector<2x8x12xf32> to vector<2x8xf32>
    %85 = arith.addf %82, %84 : vector<2x8xf32>
    %c3_44 = arith.constant 3 : index
    %c0_45 = arith.constant 0 : index
    %c0_46 = arith.constant 0 : index
    %86 = vector.load %arg8[%c3_44, %c0_45, %c0_46] : memref<11x2x8xf32, #tpu.memory_space<vmem>>, vector<1x2x8xf32>
    %87 = vector.shape_cast %86 : vector<1x2x8xf32> to vector<2x8xf32>
    %88 = vector.shape_cast %85 : vector<2x8xf32> to vector<1x2x8xf32>
    tpu.vector_store %arg8[%c3_44, %c0_45, %c0_46], %88 {strides = array<i32>} : memref<11x2x8xf32, #tpu.memory_space<vmem>>, vector<1x2x8xf32>,
    %cst_47 = arith.constant 3.000000e-01 : f32
    %89 = vector.broadcast %cst_47 : f32 to vector<2x8x12xf32>
    %90 = arith.subf %20, %89 : vector<2x8x12xf32>
    %91 = arith.mulf %90, %90 : vector<2x8x12xf32>
    %cst_48 = arith.constant 0.000000e+00 : f32
    %92 = vector.broadcast %cst_48 : f32 to vector<2x8x12xf32>
    %93 = arith.subf %92, %91 : vector<2x8x12xf32>
    %cst_49 = arith.constant 5.000000e+01 : f32
    %94 = vector.broadcast %cst_49 : f32 to vector<2x8x12xf32>
    %95 = arith.mulf %93, %94 : vector<2x8x12xf32>
    %96 = arith.truncf %95 : vector<2x8x12xf32> to vector<2x8x12xbf16>
    %97 = math.exp %96 : vector<2x8x12xbf16>
    %c4 = arith.constant 4 : index
    %c0_50 = arith.constant 0 : index
    %c0_51 = arith.constant 0 : index
    %98 = vector.load %arg8[%c4, %c0_50, %c0_51] : memref<11x2x8xf32, #tpu.memory_space<vmem>>, vector<1x2x8xf32>
    %99 = vector.shape_cast %98 : vector<1x2x8xf32> to vector<2x8xf32>
    %100 = arith.extf %97 : vector<2x8x12xbf16> to vector<2x8x12xf32>
    %cst_52 = arith.constant dense<0.000000e+00> : vector<2x8xf32>
    %101 = vector.multi_reduction <add>, %100, %cst_52 [2] : vector<2x8x12xf32> to vector<2x8xf32>
    %102 = arith.addf %99, %101 : vector<2x8xf32>
    %c4_53 = arith.constant 4 : index
    %c0_54 = arith.constant 0 : index
    %c0_55 = arith.constant 0 : index
    %103 = vector.load %arg8[%c4_53, %c0_54, %c0_55] : memref<11x2x8xf32, #tpu.memory_space<vmem>>, vector<1x2x8xf32>
    %104 = vector.shape_cast %103 : vector<1x2x8xf32> to vector<2x8xf32>
    %105 = vector.shape_cast %102 : vector<2x8xf32> to vector<1x2x8xf32>
    tpu.vector_store %arg8[%c4_53, %c0_54, %c0_55], %105 {strides = array<i32>} : memref<11x2x8xf32, #tpu.memory_space<vmem>>, vector<1x2x8xf32>,
    %cst_56 = arith.constant 1.000000e-01 : f32
    %106 = vector.broadcast %cst_56 : f32 to vector<2x8x12xf32>
    %107 = arith.subf %20, %106 : vector<2x8x12xf32>
    %108 = arith.mulf %107, %107 : vector<2x8x12xf32>
    %cst_57 = arith.constant 0.000000e+00 : f32
    %109 = vector.broadcast %cst_57 : f32 to vector<2x8x12xf32>
    %110 = arith.subf %109, %108 : vector<2x8x12xf32>
    %cst_58 = arith.constant 5.000000e+01 : f32
    %111 = vector.broadcast %cst_58 : f32 to vector<2x8x12xf32>
    %112 = arith.mulf %110, %111 : vector<2x8x12xf32>
    %113 = arith.truncf %112 : vector<2x8x12xf32> to vector<2x8x12xbf16>
    %114 = math.exp %113 : vector<2x8x12xbf16>
    %c5 = arith.constant 5 : index
    %c0_59 = arith.constant 0 : index
    %c0_60 = arith.constant 0 : index
    %115 = vector.load %arg8[%c5, %c0_59, %c0_60] : memref<11x2x8xf32, #tpu.memory_space<vmem>>, vector<1x2x8xf32>
    %116 = vector.shape_cast %115 : vector<1x2x8xf32> to vector<2x8xf32>
    %117 = arith.extf %114 : vector<2x8x12xbf16> to vector<2x8x12xf32>
    %cst_61 = arith.constant dense<0.000000e+00> : vector<2x8xf32>
    %118 = vector.multi_reduction <add>, %117, %cst_61 [2] : vector<2x8x12xf32> to vector<2x8xf32>
    %119 = arith.addf %116, %118 : vector<2x8xf32>
    %c5_62 = arith.constant 5 : index
    %c0_63 = arith.constant 0 : index
    %c0_64 = arith.constant 0 : index
    %120 = vector.load %arg8[%c5_62, %c0_63, %c0_64] : memref<11x2x8xf32, #tpu.memory_space<vmem>>, vector<1x2x8xf32>
    %121 = vector.shape_cast %120 : vector<1x2x8xf32> to vector<2x8xf32>
    %122 = vector.shape_cast %119 : vector<2x8xf32> to vector<1x2x8xf32>
    tpu.vector_store %arg8[%c5_62, %c0_63, %c0_64], %122 {strides = array<i32>} : memref<11x2x8xf32, #tpu.memory_space<vmem>>, vector<1x2x8xf32>,
    %cst_65 = arith.constant -1.000000e-01 : f32
    %123 = vector.broadcast %cst_65 : f32 to vector<2x8x12xf32>
    %124 = arith.subf %20, %123 : vector<2x8x12xf32>
    %125 = arith.mulf %124, %124 : vector<2x8x12xf32>
    %cst_66 = arith.constant 0.000000e+00 : f32
    %126 = vector.broadcast %cst_66 : f32 to vector<2x8x12xf32>
    %127 = arith.subf %126, %125 : vector<2x8x12xf32>
    %cst_67 = arith.constant 5.000000e+01 : f32
    %128 = vector.broadcast %cst_67 : f32 to vector<2x8x12xf32>
    %129 = arith.mulf %127, %128 : vector<2x8x12xf32>
    %130 = arith.truncf %129 : vector<2x8x12xf32> to vector<2x8x12xbf16>
    %131 = math.exp %130 : vector<2x8x12xbf16>
    %c6 = arith.constant 6 : index
    %c0_68 = arith.constant 0 : index
    %c0_69 = arith.constant 0 : index
    %132 = vector.load %arg8[%c6, %c0_68, %c0_69] : memref<11x2x8xf32, #tpu.memory_space<vmem>>, vector<1x2x8xf32>
    %133 = vector.shape_cast %132 : vector<1x2x8xf32> to vector<2x8xf32>
    %134 = arith.extf %131 : vector<2x8x12xbf16> to vector<2x8x12xf32>
    %cst_70 = arith.constant dense<0.000000e+00> : vector<2x8xf32>
    %135 = vector.multi_reduction <add>, %134, %cst_70 [2] : vector<2x8x12xf32> to vector<2x8xf32>
    %136 = arith.addf %133, %135 : vector<2x8xf32>
    %c6_71 = arith.constant 6 : index
    %c0_72 = arith.constant 0 : index
    %c0_73 = arith.constant 0 : index
    %137 = vector.load %arg8[%c6_71, %c0_72, %c0_73] : memref<11x2x8xf32, #tpu.memory_space<vmem>>, vector<1x2x8xf32>
    %138 = vector.shape_cast %137 : vector<1x2x8xf32> to vector<2x8xf32>
    %139 = vector.shape_cast %136 : vector<2x8xf32> to vector<1x2x8xf32>
    tpu.vector_store %arg8[%c6_71, %c0_72, %c0_73], %139 {strides = array<i32>} : memref<11x2x8xf32, #tpu.memory_space<vmem>>, vector<1x2x8xf32>,
    %cst_74 = arith.constant -3.000000e-01 : f32
    %140 = vector.broadcast %cst_74 : f32 to vector<2x8x12xf32>
    %141 = arith.subf %20, %140 : vector<2x8x12xf32>
    %142 = arith.mulf %141, %141 : vector<2x8x12xf32>
    %cst_75 = arith.constant 0.000000e+00 : f32
    %143 = vector.broadcast %cst_75 : f32 to vector<2x8x12xf32>
    %144 = arith.subf %143, %142 : vector<2x8x12xf32>
    %cst_76 = arith.constant 5.000000e+01 : f32
    %145 = vector.broadcast %cst_76 : f32 to vector<2x8x12xf32>
    %146 = arith.mulf %144, %145 : vector<2x8x12xf32>
    %147 = arith.truncf %146 : vector<2x8x12xf32> to vector<2x8x12xbf16>
    %148 = math.exp %147 : vector<2x8x12xbf16>
    %c7 = arith.constant 7 : index
    %c0_77 = arith.constant 0 : index
    %c0_78 = arith.constant 0 : index
    %149 = vector.load %arg8[%c7, %c0_77, %c0_78] : memref<11x2x8xf32, #tpu.memory_space<vmem>>, vector<1x2x8xf32>
    %150 = vector.shape_cast %149 : vector<1x2x8xf32> to vector<2x8xf32>
    %151 = arith.extf %148 : vector<2x8x12xbf16> to vector<2x8x12xf32>
    %cst_79 = arith.constant dense<0.000000e+00> : vector<2x8xf32>
    %152 = vector.multi_reduction <add>, %151, %cst_79 [2] : vector<2x8x12xf32> to vector<2x8xf32>
    %153 = arith.addf %150, %152 : vector<2x8xf32>
    %c7_80 = arith.constant 7 : index
    %c0_81 = arith.constant 0 : index
    %c0_82 = arith.constant 0 : index
    %154 = vector.load %arg8[%c7_80, %c0_81, %c0_82] : memref<11x2x8xf32, #tpu.memory_space<vmem>>, vector<1x2x8xf32>
    %155 = vector.shape_cast %154 : vector<1x2x8xf32> to vector<2x8xf32>
    %156 = vector.shape_cast %153 : vector<2x8xf32> to vector<1x2x8xf32>
    tpu.vector_store %arg8[%c7_80, %c0_81, %c0_82], %156 {strides = array<i32>} : memref<11x2x8xf32, #tpu.memory_space<vmem>>, vector<1x2x8xf32>,
    %cst_83 = arith.constant -5.000000e-01 : f32
    %157 = vector.broadcast %cst_83 : f32 to vector<2x8x12xf32>
    %158 = arith.subf %20, %157 : vector<2x8x12xf32>
    %159 = arith.mulf %158, %158 : vector<2x8x12xf32>
    %cst_84 = arith.constant 0.000000e+00 : f32
    %160 = vector.broadcast %cst_84 : f32 to vector<2x8x12xf32>
    %161 = arith.subf %160, %159 : vector<2x8x12xf32>
    %cst_85 = arith.constant 5.000000e+01 : f32
    %162 = vector.broadcast %cst_85 : f32 to vector<2x8x12xf32>
    %163 = arith.mulf %161, %162 : vector<2x8x12xf32>
    %164 = arith.truncf %163 : vector<2x8x12xf32> to vector<2x8x12xbf16>
    %165 = math.exp %164 : vector<2x8x12xbf16>
    %c8 = arith.constant 8 : index
    %c0_86 = arith.constant 0 : index
    %c0_87 = arith.constant 0 : index
    %166 = vector.load %arg8[%c8, %c0_86, %c0_87] : memref<11x2x8xf32, #tpu.memory_space<vmem>>, vector<1x2x8xf32>
    %167 = vector.shape_cast %166 : vector<1x2x8xf32> to vector<2x8xf32>
    %168 = arith.extf %165 : vector<2x8x12xbf16> to vector<2x8x12xf32>
    %cst_88 = arith.constant dense<0.000000e+00> : vector<2x8xf32>
    %169 = vector.multi_reduction <add>, %168, %cst_88 [2] : vector<2x8x12xf32> to vector<2x8xf32>
    %170 = arith.addf %167, %169 : vector<2x8xf32>
    %c8_89 = arith.constant 8 : index
    %c0_90 = arith.constant 0 : index
    %c0_91 = arith.constant 0 : index
    %171 = vector.load %arg8[%c8_89, %c0_90, %c0_91] : memref<11x2x8xf32, #tpu.memory_space<vmem>>, vector<1x2x8xf32>
    %172 = vector.shape_cast %171 : vector<1x2x8xf32> to vector<2x8xf32>
    %173 = vector.shape_cast %170 : vector<2x8xf32> to vector<1x2x8xf32>
    tpu.vector_store %arg8[%c8_89, %c0_90, %c0_91], %173 {strides = array<i32>} : memref<11x2x8xf32, #tpu.memory_space<vmem>>, vector<1x2x8xf32>,
    %cst_92 = arith.constant -0.699999988 : f32
    %174 = vector.broadcast %cst_92 : f32 to vector<2x8x12xf32>
    %175 = arith.subf %20, %174 : vector<2x8x12xf32>
    %176 = arith.mulf %175, %175 : vector<2x8x12xf32>
    %cst_93 = arith.constant 0.000000e+00 : f32
    %177 = vector.broadcast %cst_93 : f32 to vector<2x8x12xf32>
    %178 = arith.subf %177, %176 : vector<2x8x12xf32>
    %cst_94 = arith.constant 5.000000e+01 : f32
    %179 = vector.broadcast %cst_94 : f32 to vector<2x8x12xf32>
    %180 = arith.mulf %178, %179 : vector<2x8x12xf32>
    %181 = arith.truncf %180 : vector<2x8x12xf32> to vector<2x8x12xbf16>
    %182 = math.exp %181 : vector<2x8x12xbf16>
    %c9 = arith.constant 9 : index
    %c0_95 = arith.constant 0 : index
    %c0_96 = arith.constant 0 : index
    %183 = vector.load %arg8[%c9, %c0_95, %c0_96] : memref<11x2x8xf32, #tpu.memory_space<vmem>>, vector<1x2x8xf32>
    %184 = vector.shape_cast %183 : vector<1x2x8xf32> to vector<2x8xf32>
    %185 = arith.extf %182 : vector<2x8x12xbf16> to vector<2x8x12xf32>
    %cst_97 = arith.constant dense<0.000000e+00> : vector<2x8xf32>
    %186 = vector.multi_reduction <add>, %185, %cst_97 [2] : vector<2x8x12xf32> to vector<2x8xf32>
    %187 = arith.addf %184, %186 : vector<2x8xf32>
    %c9_98 = arith.constant 9 : index
    %c0_99 = arith.constant 0 : index
    %c0_100 = arith.constant 0 : index
    %188 = vector.load %arg8[%c9_98, %c0_99, %c0_100] : memref<11x2x8xf32, #tpu.memory_space<vmem>>, vector<1x2x8xf32>
    %189 = vector.shape_cast %188 : vector<1x2x8xf32> to vector<2x8xf32>
    %190 = vector.shape_cast %187 : vector<2x8xf32> to vector<1x2x8xf32>
    tpu.vector_store %arg8[%c9_98, %c0_99, %c0_100], %190 {strides = array<i32>} : memref<11x2x8xf32, #tpu.memory_space<vmem>>, vector<1x2x8xf32>,
    %cst_101 = arith.constant -0.899999976 : f32
    %191 = vector.broadcast %cst_101 : f32 to vector<2x8x12xf32>
    %192 = arith.subf %20, %191 : vector<2x8x12xf32>
    %193 = arith.mulf %192, %192 : vector<2x8x12xf32>
    %cst_102 = arith.constant 0.000000e+00 : f32
    %194 = vector.broadcast %cst_102 : f32 to vector<2x8x12xf32>
    %195 = arith.subf %194, %193 : vector<2x8x12xf32>
    %cst_103 = arith.constant 5.000000e+01 : f32
    %196 = vector.broadcast %cst_103 : f32 to vector<2x8x12xf32>
    %197 = arith.mulf %195, %196 : vector<2x8x12xf32>
    %198 = arith.truncf %197 : vector<2x8x12xf32> to vector<2x8x12xbf16>
    %199 = math.exp %198 : vector<2x8x12xbf16>
    %c10 = arith.constant 10 : index
    %c0_104 = arith.constant 0 : index
    %c0_105 = arith.constant 0 : index
    %200 = vector.load %arg8[%c10, %c0_104, %c0_105] : memref<11x2x8xf32, #tpu.memory_space<vmem>>, vector<1x2x8xf32>
    %201 = vector.shape_cast %200 : vector<1x2x8xf32> to vector<2x8xf32>
    %202 = arith.extf %199 : vector<2x8x12xbf16> to vector<2x8x12xf32>
    %cst_106 = arith.constant dense<0.000000e+00> : vector<2x8xf32>
    %203 = vector.multi_reduction <add>, %202, %cst_106 [2] : vector<2x8x12xf32> to vector<2x8xf32>
    %204 = arith.addf %201, %203 : vector<2x8xf32>
    %c10_107 = arith.constant 10 : index
    %c0_108 = arith.constant 0 : index
    %c0_109 = arith.constant 0 : index
    %205 = vector.load %arg8[%c10_107, %c0_108, %c0_109] : memref<11x2x8xf32, #tpu.memory_space<vmem>>, vector<1x2x8xf32>
    %206 = vector.shape_cast %205 : vector<1x2x8xf32> to vector<2x8xf32>
    %207 = vector.shape_cast %204 : vector<2x8xf32> to vector<1x2x8xf32>
    tpu.vector_store %arg8[%c10_107, %c0_108, %c0_109], %207 {strides = array<i32>} : memref<11x2x8xf32, #tpu.memory_space<vmem>>, vector<1x2x8xf32>,
    %c0_i32_110 = arith.constant 0 : i32
    %208 = arith.cmpi eq, %arg1, %c0_i32_110 : i32
    %209 = arith.extui %208 : i1 to i32
    %c0_i32_111 = arith.constant 0 : i32
    %210 = arith.cmpi ne, %209, %c0_i32_111 : i32
    scf.if %210 {
      %211 = arith.index_cast %arg0 : i32 to index
      %212 = memref.load %arg2[%211] : memref<9xi32, #tpu.memory_space<smem>>
      %c8_i32 = arith.constant 8 : i32
      %213 = arith.subi %c8_i32, %212 : i32
      %214 = tpu.iota {dimensions = array<i32: 1>} : vector<1x8xi32>
      %215 = vector.broadcast %213 : i32 to vector<1x8xi32>
      %216 = arith.cmpi slt, %214, %215 : vector<1x8xi32>
      %217 = arith.extui %216 : vector<1x8xi1> to vector<1x8xi32>
      %218 = arith.sitofp %217 : vector<1x8xi32> to vector<1x8xf32>
      %219 = tpu.iota {dimensions = array<i32: 1>} : vector<2x128xi32>
      %cst_112 = arith.constant 0.000000e+00 : f32
      %220 = vector.broadcast %cst_112 : f32 to vector<2x128xf32>
      %c0_113 = arith.constant 0 : index
      %c0_114 = arith.constant 0 : index
      %c0_115 = arith.constant 0 : index
      %221 = vector.load %arg8[%c0_113, %c0_114, %c0_115] : memref<11x2x8xf32, #tpu.memory_space<vmem>>, vector<1x2x8xf32>
      %222 = vector.shape_cast %221 : vector<1x2x8xf32> to vector<2x8xf32>
      %cst_116 = arith.constant 1.000000e-10 : f32
      %223 = vector.broadcast %cst_116 : f32 to vector<2x8xf32>
      %224 = arith.maximumf %222, %223 : vector<2x8xf32>
      %225 = math.log %224 : vector<2x8xf32>
      %cst_117 = arith.constant 0.00999999977 : f32
      %226 = vector.broadcast %cst_117 : f32 to vector<2x8xf32>
      %227 = arith.mulf %225, %226 : vector<2x8xf32>
      %228 = vector.broadcast %218 : vector<1x8xf32> to vector<2x8xf32>
      %229 = arith.mulf %227, %228 : vector<2x8xf32>
      %cst_118 = arith.constant dense<0.000000e+00> : vector<2xf32>
      %230 = vector.multi_reduction <add>, %229, %cst_118 [1] : vector<2x8xf32> to vector<2xf32>
      %231 = vector.shape_cast %230 : vector<2xf32> to vector<2x1xf32>
      %c0_i32_119 = arith.constant 0 : i32
      %232 = vector.broadcast %c0_i32_119 : i32 to vector<2x128xi32>
      %233 = arith.cmpi eq, %219, %232 : vector<2x128xi32>
      %234 = vector.shape_cast %231 : vector<2x1xf32> to vector<2x1xf32>
      %235 = vector.broadcast %234 : vector<2x1xf32> to vector<2x128xf32>
      %236 = arith.select %233, %235, %220 : vector<2x128xi1>, vector<2x128xf32>
      %c1_120 = arith.constant 1 : index
      %c0_121 = arith.constant 0 : index
      %c0_122 = arith.constant 0 : index
      %237 = vector.load %arg8[%c1_120, %c0_121, %c0_122] : memref<11x2x8xf32, #tpu.memory_space<vmem>>, vector<1x2x8xf32>
      %238 = vector.shape_cast %237 : vector<1x2x8xf32> to vector<2x8xf32>
      %cst_123 = arith.constant 1.000000e-10 : f32
      %239 = vector.broadcast %cst_123 : f32 to vector<2x8xf32>
      %240 = arith.maximumf %238, %239 : vector<2x8xf32>
      %241 = math.log %240 : vector<2x8xf32>
      %cst_124 = arith.constant 0.00999999977 : f32
      %242 = vector.broadcast %cst_124 : f32 to vector<2x8xf32>
      %243 = arith.mulf %241, %242 : vector<2x8xf32>
      %244 = vector.broadcast %218 : vector<1x8xf32> to vector<2x8xf32>
      %245 = arith.mulf %243, %244 : vector<2x8xf32>
      %cst_125 = arith.constant dense<0.000000e+00> : vector<2xf32>
      %246 = vector.multi_reduction <add>, %245, %cst_125 [1] : vector<2x8xf32> to vector<2xf32>
      %247 = vector.shape_cast %246 : vector<2xf32> to vector<2x1xf32>
      %c1_i32 = arith.constant 1 : i32
      %248 = vector.broadcast %c1_i32 : i32 to vector<2x128xi32>
      %249 = arith.cmpi eq, %219, %248 : vector<2x128xi32>
      %250 = vector.shape_cast %247 : vector<2x1xf32> to vector<2x1xf32>
      %251 = vector.broadcast %250 : vector<2x1xf32> to vector<2x128xf32>
      %252 = arith.select %249, %251, %236 : vector<2x128xi1>, vector<2x128xf32>
      %c2_126 = arith.constant 2 : index
      %c0_127 = arith.constant 0 : index
      %c0_128 = arith.constant 0 : index
      %253 = vector.load %arg8[%c2_126, %c0_127, %c0_128] : memref<11x2x8xf32, #tpu.memory_space<vmem>>, vector<1x2x8xf32>
      %254 = vector.shape_cast %253 : vector<1x2x8xf32> to vector<2x8xf32>
      %cst_129 = arith.constant 1.000000e-10 : f32
      %255 = vector.broadcast %cst_129 : f32 to vector<2x8xf32>
      %256 = arith.maximumf %254, %255 : vector<2x8xf32>
      %257 = math.log %256 : vector<2x8xf32>
      %cst_130 = arith.constant 0.00999999977 : f32
      %258 = vector.broadcast %cst_130 : f32 to vector<2x8xf32>
      %259 = arith.mulf %257, %258 : vector<2x8xf32>
      %260 = vector.broadcast %218 : vector<1x8xf32> to vector<2x8xf32>
      %261 = arith.mulf %259, %260 : vector<2x8xf32>
      %cst_131 = arith.constant dense<0.000000e+00> : vector<2xf32>
      %262 = vector.multi_reduction <add>, %261, %cst_131 [1] : vector<2x8xf32> to vector<2xf32>
      %263 = vector.shape_cast %262 : vector<2xf32> to vector<2x1xf32>
      %c2_i32 = arith.constant 2 : i32
      %264 = vector.broadcast %c2_i32 : i32 to vector<2x128xi32>
      %265 = arith.cmpi eq, %219, %264 : vector<2x128xi32>
      %266 = vector.shape_cast %263 : vector<2x1xf32> to vector<2x1xf32>
      %267 = vector.broadcast %266 : vector<2x1xf32> to vector<2x128xf32>
      %268 = arith.select %265, %267, %252 : vector<2x128xi1>, vector<2x128xf32>
      %c3_132 = arith.constant 3 : index
      %c0_133 = arith.constant 0 : index
      %c0_134 = arith.constant 0 : index
      %269 = vector.load %arg8[%c3_132, %c0_133, %c0_134] : memref<11x2x8xf32, #tpu.memory_space<vmem>>, vector<1x2x8xf32>
      %270 = vector.shape_cast %269 : vector<1x2x8xf32> to vector<2x8xf32>
      %cst_135 = arith.constant 1.000000e-10 : f32
      %271 = vector.broadcast %cst_135 : f32 to vector<2x8xf32>
      %272 = arith.maximumf %270, %271 : vector<2x8xf32>
      %273 = math.log %272 : vector<2x8xf32>
      %cst_136 = arith.constant 0.00999999977 : f32
      %274 = vector.broadcast %cst_136 : f32 to vector<2x8xf32>
      %275 = arith.mulf %273, %274 : vector<2x8xf32>
      %276 = vector.broadcast %218 : vector<1x8xf32> to vector<2x8xf32>
      %277 = arith.mulf %275, %276 : vector<2x8xf32>
      %cst_137 = arith.constant dense<0.000000e+00> : vector<2xf32>
      %278 = vector.multi_reduction <add>, %277, %cst_137 [1] : vector<2x8xf32> to vector<2xf32>
      %279 = vector.shape_cast %278 : vector<2xf32> to vector<2x1xf32>
      %c3_i32 = arith.constant 3 : i32
      %280 = vector.broadcast %c3_i32 : i32 to vector<2x128xi32>
      %281 = arith.cmpi eq, %219, %280 : vector<2x128xi32>
      %282 = vector.shape_cast %279 : vector<2x1xf32> to vector<2x1xf32>
      %283 = vector.broadcast %282 : vector<2x1xf32> to vector<2x128xf32>
      %284 = arith.select %281, %283, %268 : vector<2x128xi1>, vector<2x128xf32>
      %c4_138 = arith.constant 4 : index
      %c0_139 = arith.constant 0 : index
      %c0_140 = arith.constant 0 : index
      %285 = vector.load %arg8[%c4_138, %c0_139, %c0_140] : memref<11x2x8xf32, #tpu.memory_space<vmem>>, vector<1x2x8xf32>
      %286 = vector.shape_cast %285 : vector<1x2x8xf32> to vector<2x8xf32>
      %cst_141 = arith.constant 1.000000e-10 : f32
      %287 = vector.broadcast %cst_141 : f32 to vector<2x8xf32>
      %288 = arith.maximumf %286, %287 : vector<2x8xf32>
      %289 = math.log %288 : vector<2x8xf32>
      %cst_142 = arith.constant 0.00999999977 : f32
      %290 = vector.broadcast %cst_142 : f32 to vector<2x8xf32>
      %291 = arith.mulf %289, %290 : vector<2x8xf32>
      %292 = vector.broadcast %218 : vector<1x8xf32> to vector<2x8xf32>
      %293 = arith.mulf %291, %292 : vector<2x8xf32>
      %cst_143 = arith.constant dense<0.000000e+00> : vector<2xf32>
      %294 = vector.multi_reduction <add>, %293, %cst_143 [1] : vector<2x8xf32> to vector<2xf32>
      %295 = vector.shape_cast %294 : vector<2xf32> to vector<2x1xf32>
      %c4_i32 = arith.constant 4 : i32
      %296 = vector.broadcast %c4_i32 : i32 to vector<2x128xi32>
      %297 = arith.cmpi eq, %219, %296 : vector<2x128xi32>
      %298 = vector.shape_cast %295 : vector<2x1xf32> to vector<2x1xf32>
      %299 = vector.broadcast %298 : vector<2x1xf32> to vector<2x128xf32>
      %300 = arith.select %297, %299, %284 : vector<2x128xi1>, vector<2x128xf32>
      %c5_144 = arith.constant 5 : index
      %c0_145 = arith.constant 0 : index
      %c0_146 = arith.constant 0 : index
      %301 = vector.load %arg8[%c5_144, %c0_145, %c0_146] : memref<11x2x8xf32, #tpu.memory_space<vmem>>, vector<1x2x8xf32>
      %302 = vector.shape_cast %301 : vector<1x2x8xf32> to vector<2x8xf32>
      %cst_147 = arith.constant 1.000000e-10 : f32
      %303 = vector.broadcast %cst_147 : f32 to vector<2x8xf32>
      %304 = arith.maximumf %302, %303 : vector<2x8xf32>
      %305 = math.log %304 : vector<2x8xf32>
      %cst_148 = arith.constant 0.00999999977 : f32
      %306 = vector.broadcast %cst_148 : f32 to vector<2x8xf32>
      %307 = arith.mulf %305, %306 : vector<2x8xf32>
      %308 = vector.broadcast %218 : vector<1x8xf32> to vector<2x8xf32>
      %309 = arith.mulf %307, %308 : vector<2x8xf32>
      %cst_149 = arith.constant dense<0.000000e+00> : vector<2xf32>
      %310 = vector.multi_reduction <add>, %309, %cst_149 [1] : vector<2x8xf32> to vector<2xf32>
      %311 = vector.shape_cast %310 : vector<2xf32> to vector<2x1xf32>
      %c5_i32 = arith.constant 5 : i32
      %312 = vector.broadcast %c5_i32 : i32 to vector<2x128xi32>
      %313 = arith.cmpi eq, %219, %312 : vector<2x128xi32>
      %314 = vector.shape_cast %311 : vector<2x1xf32> to vector<2x1xf32>
      %315 = vector.broadcast %314 : vector<2x1xf32> to vector<2x128xf32>
      %316 = arith.select %313, %315, %300 : vector<2x128xi1>, vector<2x128xf32>
      %c6_150 = arith.constant 6 : index
      %c0_151 = arith.constant 0 : index
      %c0_152 = arith.constant 0 : index
      %317 = vector.load %arg8[%c6_150, %c0_151, %c0_152] : memref<11x2x8xf32, #tpu.memory_space<vmem>>, vector<1x2x8xf32>
      %318 = vector.shape_cast %317 : vector<1x2x8xf32> to vector<2x8xf32>
      %cst_153 = arith.constant 1.000000e-10 : f32
      %319 = vector.broadcast %cst_153 : f32 to vector<2x8xf32>
      %320 = arith.maximumf %318, %319 : vector<2x8xf32>
      %321 = math.log %320 : vector<2x8xf32>
      %cst_154 = arith.constant 0.00999999977 : f32
      %322 = vector.broadcast %cst_154 : f32 to vector<2x8xf32>
      %323 = arith.mulf %321, %322 : vector<2x8xf32>
      %324 = vector.broadcast %218 : vector<1x8xf32> to vector<2x8xf32>
      %325 = arith.mulf %323, %324 : vector<2x8xf32>
      %cst_155 = arith.constant dense<0.000000e+00> : vector<2xf32>
      %326 = vector.multi_reduction <add>, %325, %cst_155 [1] : vector<2x8xf32> to vector<2xf32>
      %327 = vector.shape_cast %326 : vector<2xf32> to vector<2x1xf32>
      %c6_i32 = arith.constant 6 : i32
      %328 = vector.broadcast %c6_i32 : i32 to vector<2x128xi32>
      %329 = arith.cmpi eq, %219, %328 : vector<2x128xi32>
      %330 = vector.shape_cast %327 : vector<2x1xf32> to vector<2x1xf32>
      %331 = vector.broadcast %330 : vector<2x1xf32> to vector<2x128xf32>
      %332 = arith.select %329, %331, %316 : vector<2x128xi1>, vector<2x128xf32>
      %c7_156 = arith.constant 7 : index
      %c0_157 = arith.constant 0 : index
      %c0_158 = arith.constant 0 : index
      %333 = vector.load %arg8[%c7_156, %c0_157, %c0_158] : memref<11x2x8xf32, #tpu.memory_space<vmem>>, vector<1x2x8xf32>
      %334 = vector.shape_cast %333 : vector<1x2x8xf32> to vector<2x8xf32>
      %cst_159 = arith.constant 1.000000e-10 : f32
      %335 = vector.broadcast %cst_159 : f32 to vector<2x8xf32>
      %336 = arith.maximumf %334, %335 : vector<2x8xf32>
      %337 = math.log %336 : vector<2x8xf32>
      %cst_160 = arith.constant 0.00999999977 : f32
      %338 = vector.broadcast %cst_160 : f32 to vector<2x8xf32>
      %339 = arith.mulf %337, %338 : vector<2x8xf32>
      %340 = vector.broadcast %218 : vector<1x8xf32> to vector<2x8xf32>
      %341 = arith.mulf %339, %340 : vector<2x8xf32>
      %cst_161 = arith.constant dense<0.000000e+00> : vector<2xf32>
      %342 = vector.multi_reduction <add>, %341, %cst_161 [1] : vector<2x8xf32> to vector<2xf32>
      %343 = vector.shape_cast %342 : vector<2xf32> to vector<2x1xf32>
      %c7_i32 = arith.constant 7 : i32
      %344 = vector.broadcast %c7_i32 : i32 to vector<2x128xi32>
      %345 = arith.cmpi eq, %219, %344 : vector<2x128xi32>
      %346 = vector.shape_cast %343 : vector<2x1xf32> to vector<2x1xf32>
      %347 = vector.broadcast %346 : vector<2x1xf32> to vector<2x128xf32>
      %348 = arith.select %345, %347, %332 : vector<2x128xi1>, vector<2x128xf32>
      %c8_162 = arith.constant 8 : index
      %c0_163 = arith.constant 0 : index
      %c0_164 = arith.constant 0 : index
      %349 = vector.load %arg8[%c8_162, %c0_163, %c0_164] : memref<11x2x8xf32, #tpu.memory_space<vmem>>, vector<1x2x8xf32>
      %350 = vector.shape_cast %349 : vector<1x2x8xf32> to vector<2x8xf32>
      %cst_165 = arith.constant 1.000000e-10 : f32
      %351 = vector.broadcast %cst_165 : f32 to vector<2x8xf32>
      %352 = arith.maximumf %350, %351 : vector<2x8xf32>
      %353 = math.log %352 : vector<2x8xf32>
      %cst_166 = arith.constant 0.00999999977 : f32
      %354 = vector.broadcast %cst_166 : f32 to vector<2x8xf32>
      %355 = arith.mulf %353, %354 : vector<2x8xf32>
      %356 = vector.broadcast %218 : vector<1x8xf32> to vector<2x8xf32>
      %357 = arith.mulf %355, %356 : vector<2x8xf32>
      %cst_167 = arith.constant dense<0.000000e+00> : vector<2xf32>
      %358 = vector.multi_reduction <add>, %357, %cst_167 [1] : vector<2x8xf32> to vector<2xf32>
      %359 = vector.shape_cast %358 : vector<2xf32> to vector<2x1xf32>
      %c8_i32_168 = arith.constant 8 : i32
      %360 = vector.broadcast %c8_i32_168 : i32 to vector<2x128xi32>
      %361 = arith.cmpi eq, %219, %360 : vector<2x128xi32>
      %362 = vector.shape_cast %359 : vector<2x1xf32> to vector<2x1xf32>
      %363 = vector.broadcast %362 : vector<2x1xf32> to vector<2x128xf32>
      %364 = arith.select %361, %363, %348 : vector<2x128xi1>, vector<2x128xf32>
      %c9_169 = arith.constant 9 : index
      %c0_170 = arith.constant 0 : index
      %c0_171 = arith.constant 0 : index
      %365 = vector.load %arg8[%c9_169, %c0_170, %c0_171] : memref<11x2x8xf32, #tpu.memory_space<vmem>>, vector<1x2x8xf32>
      %366 = vector.shape_cast %365 : vector<1x2x8xf32> to vector<2x8xf32>
      %cst_172 = arith.constant 1.000000e-10 : f32
      %367 = vector.broadcast %cst_172 : f32 to vector<2x8xf32>
      %368 = arith.maximumf %366, %367 : vector<2x8xf32>
      %369 = math.log %368 : vector<2x8xf32>
      %cst_173 = arith.constant 0.00999999977 : f32
      %370 = vector.broadcast %cst_173 : f32 to vector<2x8xf32>
      %371 = arith.mulf %369, %370 : vector<2x8xf32>
      %372 = vector.broadcast %218 : vector<1x8xf32> to vector<2x8xf32>
      %373 = arith.mulf %371, %372 : vector<2x8xf32>
      %cst_174 = arith.constant dense<0.000000e+00> : vector<2xf32>
      %374 = vector.multi_reduction <add>, %373, %cst_174 [1] : vector<2x8xf32> to vector<2xf32>
      %375 = vector.shape_cast %374 : vector<2xf32> to vector<2x1xf32>
      %c9_i32 = arith.constant 9 : i32
      %376 = vector.broadcast %c9_i32 : i32 to vector<2x128xi32>
      %377 = arith.cmpi eq, %219, %376 : vector<2x128xi32>
      %378 = vector.shape_cast %375 : vector<2x1xf32> to vector<2x1xf32>
      %379 = vector.broadcast %378 : vector<2x1xf32> to vector<2x128xf32>
      %380 = arith.select %377, %379, %364 : vector<2x128xi1>, vector<2x128xf32>
      %c10_175 = arith.constant 10 : index
      %c0_176 = arith.constant 0 : index
      %c0_177 = arith.constant 0 : index
      %381 = vector.load %arg8[%c10_175, %c0_176, %c0_177] : memref<11x2x8xf32, #tpu.memory_space<vmem>>, vector<1x2x8xf32>
      %382 = vector.shape_cast %381 : vector<1x2x8xf32> to vector<2x8xf32>
      %cst_178 = arith.constant 1.000000e-10 : f32
      %383 = vector.broadcast %cst_178 : f32 to vector<2x8xf32>
      %384 = arith.maximumf %382, %383 : vector<2x8xf32>
      %385 = math.log %384 : vector<2x8xf32>
      %cst_179 = arith.constant 0.00999999977 : f32
      %386 = vector.broadcast %cst_179 : f32 to vector<2x8xf32>
      %387 = arith.mulf %385, %386 : vector<2x8xf32>
      %388 = vector.broadcast %218 : vector<1x8xf32> to vector<2x8xf32>
      %389 = arith.mulf %387, %388 : vector<2x8xf32>
      %cst_180 = arith.constant dense<0.000000e+00> : vector<2xf32>
      %390 = vector.multi_reduction <add>, %389, %cst_180 [1] : vector<2x8xf32> to vector<2xf32>
      %391 = vector.shape_cast %390 : vector<2xf32> to vector<2x1xf32>
      %c10_i32 = arith.constant 10 : i32
      %392 = vector.broadcast %c10_i32 : i32 to vector<2x128xi32>
      %393 = arith.cmpi eq, %219, %392 : vector<2x128xi32>
      %394 = vector.shape_cast %391 : vector<2x1xf32> to vector<2x1xf32>
      %395 = vector.broadcast %394 : vector<2x1xf32> to vector<2x128xf32>
      %396 = arith.select %393, %395, %380 : vector<2x128xi1>, vector<2x128xf32>
      %c0_181 = arith.constant 0 : index
      %c0_182 = arith.constant 0 : index
      %c0_183 = arith.constant 0 : index
      %397 = vector.load %arg7[%c0_181, %c0_182, %c0_183] : memref<1x2x128xf32, #tpu.memory_space<vmem>>, vector<1x2x128xf32>
      %398 = vector.shape_cast %397 : vector<1x2x128xf32> to vector<2x128xf32>
      %399 = vector.shape_cast %396 : vector<2x128xf32> to vector<1x2x128xf32>
      tpu.vector_store %arg7[%c0_181, %c0_182, %c0_183], %399 {strides = array<i32>} : memref<1x2x128xf32, #tpu.memory_space<vmem>>, vector<1x2x128xf32>,
    } else {
    }
    return
  }
  func.func @transform_0(%arg0: i32, %arg1: i32, %arg2: memref<9xi32, #tpu.memory_space<smem>>, %arg3: memref<9xi32, #tpu.memory_space<smem>>, %arg4: memref<9xi32, #tpu.memory_space<smem>>) -> (i32, i32, i32, i32) {
    %0 = arith.index_cast %arg0 : i32 to index
    %1 = memref.load %arg2[%0] : memref<9xi32, #tpu.memory_space<smem>>
    %c0_i32 = arith.constant 0 : i32
    %c0_i32_0 = arith.constant 0 : i32
    %c0_i32_1 = arith.constant 0 : i32
    %c0_i32_2 = arith.constant 0 : i32
    return %1, %c0_i32, %c0_i32_0, %c0_i32_1 : i32, i32, i32, i32
  }
  func.func @transform_1(%arg0: i32, %arg1: i32, %arg2: memref<9xi32, #tpu.memory_space<smem>>, %arg3: memref<9xi32, #tpu.memory_space<smem>>, %arg4: memref<9xi32, #tpu.memory_space<smem>>) -> (i32, i32, i32, i32) {
    %0 = arith.index_cast %arg0 : i32 to index
    %1 = memref.load %arg3[%0] : memref<9xi32, #tpu.memory_space<smem>>
    %c0_i32 = arith.constant 0 : i32
    %c0_i32_0 = arith.constant 0 : i32
    %c0_i32_1 = arith.constant 0 : i32
    return %1, %c0_i32, %arg1, %c0_i32_0 : i32, i32, i32, i32
  }
  func.func @transform_2(%arg0: i32, %arg1: i32, %arg2: memref<9xi32, #tpu.memory_space<smem>>, %arg3: memref<9xi32, #tpu.memory_space<smem>>, %arg4: memref<9xi32, #tpu.memory_space<smem>>) -> (i32, i32, i32) {
    %0 = arith.index_cast %arg0 : i32 to index
    %1 = memref.load %arg4[%0] : memref<9xi32, #tpu.memory_space<smem>>
    %c0_i32 = arith.constant 0 : i32
    %c0_i32_0 = arith.constant 0 : i32
    %c0_i32_1 = arith.constant 0 : i32
    return %1, %c0_i32, %c0_i32_0 : i32, i32, i32
  }
}

</mosaic_0001>

<llo_original>
// kernel: convknrm_forward.4
$region0: #{convknrm_forward.4}
  #allocation0 [shape = 'u32[]', space=smem, size = 0x4, offset = 0x4, fixed_abs, tag = 'smem constant byte address 0x4 - core index']
  #allocation1 [shape = 'u32[72,128]{1,0:T(1,128)}', space=vmem, size = 0x9000, scoped, tag = 'internal scratch']
  %s0 = inlined_call_operand.vmem [shape: bf16[24,96], index: 0, kind: input, shape index: {}]
  %s1 = inlined_call_operand.vmem [shape: bf16[3,96,128], index: 1, kind: input, shape index: {}]
  %s2 = inlined_call_operand.vmem [shape: f32[3,1,128], index: 2, kind: input, shape index: {}]
  %s3 = inlined_call_operand.vmem [shape: bf16[3,24,128], index: 3, kind: output, shape index: {}]
  %s4 = sld [smem:[#allocation0]]
  $region22: #{convknrm_forward.4} parent=0
    _
  %s6 = ssub.s32 1, %s4
  %s7 = scalar_select 0, %s6, %s4
  // Predicated region
  $region2: #{convknrm_forward.4} parent=0 // pred_check
    _
  $region3: #{convknrm_forward.4} parent=0 // pred_check_branch
    %9 = sbr.rel (0) target = $region5
  $region4: #{convknrm_forward.4} parent=0 // pred_region
    _
  $region5: #{convknrm_forward.4} parent=0 // pred_fallthru
    _
  // Predicated region
  $region6: #{convknrm_forward.4} parent=0 // pred_check
    _
  $region7: #{convknrm_forward.4} parent=0 // pred_check_branch
    %11 = sbr.rel (0) target = $region9
  $region8: #{convknrm_forward.4} parent=0 // pred_region
    _
  $region9: #{convknrm_forward.4} parent=0 // pred_fallthru
    _
  // Predicated region
  $region10: #{convknrm_forward.4} parent=0 // pred_check
    _
  $region11: #{convknrm_forward.4} parent=0 // pred_check_branch
    %13 = sbr.rel (0) target = $region13
  $region12: #{convknrm_forward.4} parent=0 // pred_region
    _
  $region13: #{convknrm_forward.4} parent=0 // pred_fallthru
    _
  %v15 = vld [vmem:[%s0] sm:$0xf]
  %v16 = vld [vmem:[%s0 + $0x4] sm:$0xf]
  %v17 = vld [vmem:[%s0 + $0x8] sm:$0xf]
  %v18 = vld [vmem:[%s1] sm:$0xf]
  %v19 = vld [vmem:[%s1 + $0x4] sm:$0xf]
  %v20 = vld [vmem:[%s1 + $0x8] sm:$0xf]
  %v21 = vld [vmem:[%s1 + $0xc] sm:$0xf]
  %v22 = vld [vmem:[%s1 + $0x10] sm:$0xf]
  %v23 = vld [vmem:[%s1 + $0x14] sm:$0xf]
  %v24 = vld [vmem:[%s1 + $0x18] sm:$0xf]
  %v25 = vld [vmem:[%s1 + $0x1c] sm:$0xf]
  %v26 = vld [vmem:[%s1 + $0x20] sm:$0xf]
  %v27 = vld [vmem:[%s1 + $0x24] sm:$0xf]
  %v28 = vld [vmem:[%s1 + $0x28] sm:$0xf]
  %v29 = vld [vmem:[%s1 + $0x2c] sm:$0xf]
  %v30 = vld [vmem:[%s2] sm:$0x1]
  %v32 = vperm.slane %v30, 0
  %v37 = vunpack.c.l.b16 %v15
  %v38 = vunpack.c.l.b16 %v16
  %v39 = vunpack.c.l.b16 %v17
  %v40 = vpack.c.b16 %v38, %v37
  %v41 = vpack.c.b16 %v39, %v39
  %v54 = vunpack.c.l.b16 %v18
  %v55 = vunpack.c.l.b16 %v19
  %v56 = vunpack.c.l.b16 %v20
  %v57 = vunpack.c.l.b16 %v21
  %v58 = vunpack.c.l.b16 %v22
  %v59 = vunpack.c.l.b16 %v23
  %v60 = vunpack.c.l.b16 %v24
  %v61 = vunpack.c.l.b16 %v25
  %v62 = vunpack.c.l.b16 %v26
  %v63 = vunpack.c.l.b16 %v27
  %v64 = vunpack.c.l.b16 %v28
  %v65 = vunpack.c.l.b16 %v29
  %v66 = vpack.c.b16 %v55, %v54
  %v67 = vpack.c.b16 %v57, %v56
  %v68 = vpack.c.b16 %v59, %v58
  %v69 = vpack.c.b16 %v61, %v60
  %v70 = vpack.c.b16 %v63, %v62
  %v71 = vpack.c.b16 %v65, %v64
  %vm78 = vcmask 785408
  %v80 = vsel %vm78, %v40, 0
  %v83 = vsel %vm78, %v41, 0
  %85 = vmatpush.bf16.msra.mxu0 0
  %86 = vmatpush.bf16.msra.mxu0 0
  %87 = vmatpush.bf16.msra.mxu0 %v71
  %88 = vmatpush.bf16.msra.mxu0 %v70
  %89 = vmatpush.bf16.msra.mxu0 %v69
  %90 = vmatpush.bf16.msra.mxu0 %v68
  %91 = vmatpush.bf16.msra.mxu0 %v67
  %92 = vmatpush.bf16.msra.mxu0 %v66
  %93 = vmatmul.bf16.gmra.mxu0 %v80
  %v94 = vpop.f32.mrf.mxu0
  %v95 = vadd.f32 %v32, %v94
  %v96 = vpop.f32.mrf.mxu0
  %v97 = vadd.f32 %v32, %v96
  %98 = vmatmul.bf16.gmra.mxu0 %v83
  %v99 = vpop.f32.mrf.mxu0
  %v100 = vadd.f32 %v32, %v99
  %v101 = vpop.f32.mrf.mxu0
  %102 = vdwg.mxu0
  %v103 = vmax.f32 %v95, 0.0
  %v104 = vmax.f32 %v97, 0.0
  %v105 = vmax.f32 %v100, 0.0
  %v106 = vadd.f32 %v103, 1e-09
  %v107 = vadd.f32 %v104, 1e-09
  %v108 = vadd.f32 %v105, 1e-09
  %v109 = vmul.f32 %v106, %v106
  %v110 = vmul.f32 %v107, %v107
  %v111 = vmul.f32 %v108, %v108
  %112 = vadd.xlane.f32.xlu0 %v109
  %v113 = vpop.xlane.xlu0 %112
  %114 = vadd.xlane.f32.xlu0 %v110
  %v115 = vpop.xlane.xlu0 %114
  %116 = vadd.xlane.f32.xlu0 %v111
  %v117 = vpop.xlane.xlu0 %116
  %v118 = vmax.f32 %v113, 1e-20
  %v119 = vmax.f32 %v115, 1e-20
  %v120 = vmax.f32 %v117, 1e-20
  %v121 = vrsqrt.pop %v118
  %v122 = vmul.f32 %v121, %v118
  %v123 = vmul.f32 %v122, %v121
  %v124 = vmul.f32 0.5, %v123
  %v125 = vsub.f32 1.5, %v124
  %v126 = vmul.f32 %v121, %v125
  %vm127 = vweird.f32 %v118
  %vm128 = vweird.f32 %v121
  %vm129 = vmor %vm127, %vm128
  %v130 = vsel %vm129, %v121, %v126
  %v131 = vrsqrt.pop %v119
  %v132 = vmul.f32 %v131, %v119
  %v133 = vmul.f32 %v132, %v131
  %v134 = vmul.f32 0.5, %v133
  %v135 = vsub.f32 1.5, %v134
  %v136 = vmul.f32 %v131, %v135
  %vm137 = vweird.f32 %v119
  %vm138 = vweird.f32 %v131
  %vm139 = vmor %vm137, %vm138
  %v140 = vsel %vm139, %v131, %v136
  %v141 = vrsqrt.pop %v120
  %v142 = vmul.f32 %v141, %v120
  %v143 = vmul.f32 %v142, %v141
  %v144 = vmul.f32 0.5, %v143
  %v145 = vsub.f32 1.5, %v144
  %v146 = vmul.f32 %v141, %v145
  %vm147 = vweird.f32 %v120
  %vm148 = vweird.f32 %v141
  %vm149 = vmor %vm147, %vm148
  %v150 = vsel %vm149, %v141, %v146
  %v151 = vmul.f32 %v106, %v130
  %v152 = vmul.f32 %v107, %v140
  %v153 = vmul.f32 %v108, %v150
  %v154 = vpack.c.bf16 %v151, %v151
  %v155 = vpack.c.bf16 %v152, %v152
  %v156 = vpack.c.bf16 %v153, %v153
  %157 = vst [vmem:[%s3] sm:$0xf] %v154
  %158 = vst [vmem:[%s3 + $0x4] sm:$0xf] %v155
  %159 = vst [vmem:[%s3 + $0x8] sm:$0xf] %v156
  %s160 = scalar_lea.vmem %s1, 48
  %v161 = vld [vmem:[%s160] sm:$0xf]
  %v162 = vld [vmem:[%s160 + $0x4] sm:$0xf]
  %v163 = vld [vmem:[%s160 + $0x8] sm:$0xf]
  %v164 = vld [vmem:[%s160 + $0xc] sm:$0xf]
  %v165 = vld [vmem:[%s160 + $0x10] sm:$0xf]
  %v166 = vld [vmem:[%s160 + $0x14] sm:$0xf]
  %v167 = vld [vmem:[%s160 + $0x18] sm:$0xf]
  %v168 = vld [vmem:[%s160 + $0x1c] sm:$0xf]
  %v169 = vld [vmem:[%s160 + $0x20] sm:$0xf]
  %v170 = vld [vmem:[%s160 + $0x24] sm:$0xf]
  %v171 = vld [vmem:[%s160 + $0x28] sm:$0xf]
  %v172 = vld [vmem:[%s160 + $0x2c] sm:$0xf]
  %s173 = scalar_lea.vmem %s2, 1
  %v174 = vld [vmem:[%s173] sm:$0x1]
  %v176 = vperm.slane %v174, 0
  %v190 = vunpack.c.l.b16 %v161
  %v191 = vunpack.c.l.b16 %v162
  %v192 = vunpack.c.l.b16 %v163
  %v193 = vunpack.c.l.b16 %v164
  %v194 = vunpack.c.l.b16 %v165
  %v195 = vunpack.c.l.b16 %v166
  %v196 = vunpack.c.l.b16 %v167
  %v197 = vunpack.c.l.b16 %v168
  %v198 = vunpack.c.l.b16 %v169
  %v199 = vunpack.c.l.b16 %v170
  %v200 = vunpack.c.l.b16 %v171
  %v201 = vunpack.c.l.b16 %v172
  %v202 = vpack.c.b16 %v191, %v190
  %v203 = vpack.c.b16 %v193, %v192
  %v204 = vpack.c.b16 %v195, %v194
  %v205 = vpack.c.b16 %v197, %v196
  %v206 = vpack.c.b16 %v199, %v198
  %v207 = vpack.c.b16 %v201, %v200
  %214 = vmatpush.bf16.msra.mxu0 0
  %215 = vmatpush.bf16.msra.mxu0 0
  %216 = vmatpush.bf16.msra.mxu0 %v207
  %217 = vmatpush.bf16.msra.mxu0 %v206
  %218 = vmatpush.bf16.msra.mxu0 %v205
  %219 = vmatpush.bf16.msra.mxu0 %v204
  %220 = vmatpush.bf16.msra.mxu0 %v203
  %221 = vmatpush.bf16.msra.mxu0 %v202
  %222 = vmatmul.bf16.gmra.mxu0 %v80
  %v223 = vpop.f32.mrf.mxu0
  %v224 = vadd.f32 %v176, %v223
  %v225 = vpop.f32.mrf.mxu0
  %v226 = vadd.f32 %v176, %v225
  %227 = vmatmul.bf16.gmra.mxu0 %v83
  %v228 = vpop.f32.mrf.mxu0
  %v229 = vadd.f32 %v176, %v228
  %v230 = vpop.f32.mrf.mxu0
  %231 = vdwg.mxu0
  %v232 = vmax.f32 %v224, 0.0
  %v233 = vmax.f32 %v226, 0.0
  %v234 = vmax.f32 %v229, 0.0
  %v235 = vadd.f32 %v232, 1e-09
  %v236 = vadd.f32 %v233, 1e-09
  %v237 = vadd.f32 %v234, 1e-09
  %v238 = vmul.f32 %v235, %v235
  %v239 = vmul.f32 %v236, %v236
  %v240 = vmul.f32 %v237, %v237
  %241 = vadd.xlane.f32.xlu0 %v238
  %v242 = vpop.xlane.xlu0 %241
  %243 = vadd.xlane.f32.xlu0 %v239
  %v244 = vpop.xlane.xlu0 %243
  %245 = vadd.xlane.f32.xlu0 %v240
  %v246 = vpop.xlane.xlu0 %245
  %v247 = vmax.f32 %v242, 1e-20
  %v248 = vmax.f32 %v244, 1e-20
  %v249 = vmax.f32 %v246, 1e-20
  %v250 = vrsqrt.pop %v247
  %v251 = vmul.f32 %v250, %v247
  %v252 = vmul.f32 %v251, %v250
  %v253 = vmul.f32 0.5, %v252
  %v254 = vsub.f32 1.5, %v253
  %v255 = vmul.f32 %v250, %v254
  %vm256 = vweird.f32 %v247
  %vm257 = vweird.f32 %v250
  %vm258 = vmor %vm256, %vm257
  %v259 = vsel %vm258, %v250, %v255
  %v260 = vrsqrt.pop %v248
  %v261 = vmul.f32 %v260, %v248
  %v262 = vmul.f32 %v261, %v260
  %v263 = vmul.f32 0.5, %v262
  %v264 = vsub.f32 1.5, %v263
  %v265 = vmul.f32 %v260, %v264
  %vm266 = vweird.f32 %v248
  %vm267 = vweird.f32 %v260
  %vm268 = vmor %vm266, %vm267
  %v269 = vsel %vm268, %v260, %v265
  %v270 = vrsqrt.pop %v249
  %v271 = vmul.f32 %v270, %v249
  %v272 = vmul.f32 %v271, %v270
  %v273 = vmul.f32 0.5, %v272
  %v274 = vsub.f32 1.5, %v273
  %v275 = vmul.f32 %v270, %v274
  %vm276 = vweird.f32 %v249
  %vm277 = vweird.f32 %v270
  %vm278 = vmor %vm276, %vm277
  %v279 = vsel %vm278, %v270, %v275
  %v280 = vmul.f32 %v235, %v259
  %v281 = vmul.f32 %v236, %v269
  %v282 = vmul.f32 %v237, %v279
  %v283 = vpack.c.bf16 %v280, %v280
  %v284 = vpack.c.bf16 %v281, %v281
  %v285 = vpack.c.bf16 %v282, %v282
  %s286 = scalar_lea.vmem %s3, 12
  %287 = vst [vmem:[%s286] sm:$0xf] %v283
  %288 = vst [vmem:[%s286 + $0x4] sm:$0xf] %v284
  %289 = vst [vmem:[%s286 + $0x8] sm:$0xf] %v285
  %s290 = scalar_lea.vmem %s1, 96
  %v291 = vld [vmem:[%s290] sm:$0xf]
  %v292 = vld [vmem:[%s290 + $0x4] sm:$0xf]
  %v293 = vld [vmem:[%s290 + $0x8] sm:$0xf]
  %v294 = vld [vmem:[%s290 + $0xc] sm:$0xf]
  %v295 = vld [vmem:[%s290 + $0x10] sm:$0xf]
  %v296 = vld [vmem:[%s290 + $0x14] sm:$0xf]
  %v297 = vld [vmem:[%s290 + $0x18] sm:$0xf]
  %v298 = vld [vmem:[%s290 + $0x1c] sm:$0xf]
  %v299 = vld [vmem:[%s290 + $0x20] sm:$0xf]
  %v300 = vld [vmem:[%s290 + $0x24] sm:$0xf]
  %v301 = vld [vmem:[%s290 + $0x28] sm:$0xf]
  %v302 = vld [vmem:[%s290 + $0x2c] sm:$0xf]
  %s303 = scalar_lea.vmem %s2, 2
  %v304 = vld [vmem:[%s303] sm:$0x1]
  %v306 = vperm.slane %v304, 0
  %v320 = vunpack.c.l.b16 %v291
  %v321 = vunpack.c.l.b16 %v292
  %v322 = vunpack.c.l.b16 %v293
  %v323 = vunpack.c.l.b16 %v294
  %v324 = vunpack.c.l.b16 %v295
  %v325 = vunpack.c.l.b16 %v296
  %v326 = vunpack.c.l.b16 %v297
  %v327 = vunpack.c.l.b16 %v298
  %v328 = vunpack.c.l.b16 %v299
  %v329 = vunpack.c.l.b16 %v300
  %v330 = vunpack.c.l.b16 %v301
  %v331 = vunpack.c.l.b16 %v302
  %v332 = vpack.c.b16 %v321, %v320
  %v333 = vpack.c.b16 %v323, %v322
  %v334 = vpack.c.b16 %v325, %v324
  %v335 = vpack.c.b16 %v327, %v326
  %v336 = vpack.c.b16 %v329, %v328
  %v337 = vpack.c.b16 %v331, %v330
  %344 = vmatpush.bf16.msra.mxu0 0
  %345 = vmatpush.bf16.msra.mxu0 0
  %346 = vmatpush.bf16.msra.mxu0 %v337
  %347 = vmatpush.bf16.msra.mxu0 %v336
  %348 = vmatpush.bf16.msra.mxu0 %v335
  %349 = vmatpush.bf16.msra.mxu0 %v334
  %350 = vmatpush.bf16.msra.mxu0 %v333
  %351 = vmatpush.bf16.msra.mxu0 %v332
  %352 = vmatmul.bf16.gmra.mxu0 %v80
  %v353 = vpop.f32.mrf.mxu0
  %v354 = vadd.f32 %v306, %v353
  %v355 = vpop.f32.mrf.mxu0
  %v356 = vadd.f32 %v306, %v355
  %357 = vmatmul.bf16.gmra.mxu0 %v83
  %v358 = vpop.f32.mrf.mxu0
  %v359 = vadd.f32 %v306, %v358
  %v360 = vpop.f32.mrf.mxu0
  %361 = vdwg.mxu0
  %v362 = vmax.f32 %v354, 0.0
  %v363 = vmax.f32 %v356, 0.0
  %v364 = vmax.f32 %v359, 0.0
  %v365 = vadd.f32 %v362, 1e-09
  %v366 = vadd.f32 %v363, 1e-09
  %v367 = vadd.f32 %v364, 1e-09
  %v368 = vmul.f32 %v365, %v365
  %v369 = vmul.f32 %v366, %v366
  %v370 = vmul.f32 %v367, %v367
  %371 = vadd.xlane.f32.xlu0 %v368
  %v372 = vpop.xlane.xlu0 %371
  %373 = vadd.xlane.f32.xlu0 %v369
  %v374 = vpop.xlane.xlu0 %373
  %375 = vadd.xlane.f32.xlu0 %v370
  %v376 = vpop.xlane.xlu0 %375
  %v377 = vmax.f32 %v372, 1e-20
  %v378 = vmax.f32 %v374, 1e-20
  %v379 = vmax.f32 %v376, 1e-20
  %v380 = vrsqrt.pop %v377
  %v381 = vmul.f32 %v380, %v377
  %v382 = vmul.f32 %v381, %v380
  %v383 = vmul.f32 0.5, %v382
  %v384 = vsub.f32 1.5, %v383
  %v385 = vmul.f32 %v380, %v384
  %vm386 = vweird.f32 %v377
  %vm387 = vweird.f32 %v380
  %vm388 = vmor %vm386, %vm387
  %v389 = vsel %vm388, %v380, %v385
  %v390 = vrsqrt.pop %v378
  %v391 = vmul.f32 %v390, %v378
  %v392 = vmul.f32 %v391, %v390
  %v393 = vmul.f32 0.5, %v392
  %v394 = vsub.f32 1.5, %v393
  %v395 = vmul.f32 %v390, %v394
  %vm396 = vweird.f32 %v378
  %vm397 = vweird.f32 %v390
  %vm398 = vmor %vm396, %vm397
  %v399 = vsel %vm398, %v390, %v395
  %v400 = vrsqrt.pop %v379
  %v401 = vmul.f32 %v400, %v379
  %v402 = vmul.f32 %v401, %v400
  %v403 = vmul.f32 0.5, %v402
  %v404 = vsub.f32 1.5, %v403
  %v405 = vmul.f32 %v400, %v404
  %vm406 = vweird.f32 %v379
  %vm407 = vweird.f32 %v400
  %vm408 = vmor %vm406, %vm407
  %v409 = vsel %vm408, %v400, %v405
  %v410 = vmul.f32 %v365, %v389
  %v411 = vmul.f32 %v366, %v399
  %v412 = vmul.f32 %v367, %v409
  %v413 = vpack.c.bf16 %v410, %v410
  %v414 = vpack.c.bf16 %v411, %v411
  %v415 = vpack.c.bf16 %v412, %v412
  %s416 = scalar_lea.vmem %s3, 24
  %417 = vst [vmem:[%s416] sm:$0xf] %v413
  %418 = vst [vmem:[%s416 + $0x4] sm:$0xf] %v414
  %419 = vst [vmem:[%s416 + $0x8] sm:$0xf] %v415
  // Predicated region
  $region14: #{convknrm_forward.4} parent=0 // pred_check
    _
  $region15: #{convknrm_forward.4} parent=0 // pred_check_branch
    %421 = sbr.rel (0) target = $region17
  $region16: #{convknrm_forward.4} parent=0 // pred_region
    _
  $region17: #{convknrm_forward.4} parent=0 // pred_fallthru
    _
  // Predicated region
  $region18: #{convknrm_forward.4} parent=0 // pred_check
    _
  $region19: #{convknrm_forward.4} parent=0 // pred_check_branch
    %423 = sbr.rel (0) target = $region21
  $region20: #{convknrm_forward.4} parent=0 // pred_region
    _
  $region21: #{convknrm_forward.4} parent=0 // pred_fallthru
    _

// kernel: convknrm_forward.3
$region0: #{convknrm_forward.3}
  #allocation0 [shape = 'u32[]', space=smem, size = 0x4, offset = 0x4, fixed_abs, tag = 'smem constant byte address 0x4 - core index']
  #allocation1 [shape = 'u32[72,128]{1,0:T(1,128)}', space=vmem, size = 0x9000, scoped, tag = 'internal scratch']
  %s0 = inlined_call_operand.vmem [shape: bf16[16,96], index: 0, kind: input, shape index: {}]
  %s1 = inlined_call_operand.vmem [shape: bf16[3,96,128], index: 1, kind: input, shape index: {}]
  %s2 = inlined_call_operand.vmem [shape: f32[3,1,128], index: 2, kind: input, shape index: {}]
  %s3 = inlined_call_operand.vmem [shape: bf16[3,16,128], index: 3, kind: output, shape index: {}]
  %s4 = sld [smem:[#allocation0]]
  $region22: #{convknrm_forward.3} parent=0
    _
  %s6 = ssub.s32 1, %s4
  %s7 = scalar_select 0, %s6, %s4
  // Predicated region
  $region2: #{convknrm_forward.3} parent=0 // pred_check
    _
  $region3: #{convknrm_forward.3} parent=0 // pred_check_branch
    %9 = sbr.rel (0) target = $region5
  $region4: #{convknrm_forward.3} parent=0 // pred_region
    _
  $region5: #{convknrm_forward.3} parent=0 // pred_fallthru
    _
  // Predicated region
  $region6: #{convknrm_forward.3} parent=0 // pred_check
    _
  $region7: #{convknrm_forward.3} parent=0 // pred_check_branch
    %11 = sbr.rel (0) target = $region9
  $region8: #{convknrm_forward.3} parent=0 // pred_region
    _
  $region9: #{convknrm_forward.3} parent=0 // pred_fallthru
    _
  // Predicated region
  $region10: #{convknrm_forward.3} parent=0 // pred_check
    _
  $region11: #{convknrm_forward.3} parent=0 // pred_check_branch
    %13 = sbr.rel (0) target = $region13
  $region12: #{convknrm_forward.3} parent=0 // pred_region
    _
  $region13: #{convknrm_forward.3} parent=0 // pred_fallthru
    _
  %v15 = vld [vmem:[%s0] sm:$0xf]
  %v16 = vld [vmem:[%s0 + $0x4] sm:$0xf]
  %v17 = vld [vmem:[%s1] sm:$0xf]
  %v18 = vld [vmem:[%s1 + $0x4] sm:$0xf]
  %v19 = vld [vmem:[%s1 + $0x8] sm:$0xf]
  %v20 = vld [vmem:[%s1 + $0xc] sm:$0xf]
  %v21 = vld [vmem:[%s1 + $0x10] sm:$0xf]
  %v22 = vld [vmem:[%s1 + $0x14] sm:$0xf]
  %v23 = vld [vmem:[%s1 + $0x18] sm:$0xf]
  %v24 = vld [vmem:[%s1 + $0x1c] sm:$0xf]
  %v25 = vld [vmem:[%s1 + $0x20] sm:$0xf]
  %v26 = vld [vmem:[%s1 + $0x24] sm:$0xf]
  %v27 = vld [vmem:[%s1 + $0x28] sm:$0xf]
  %v28 = vld [vmem:[%s1 + $0x2c] sm:$0xf]
  %v29 = vld [vmem:[%s2] sm:$0x1]
  %v31 = vperm.slane %v29, 0
  %v35 = vunpack.c.l.b16 %v15
  %v36 = vunpack.c.l.b16 %v16
  %v37 = vpack.c.b16 %v36, %v35
  %v50 = vunpack.c.l.b16 %v17
  %v51 = vunpack.c.l.b16 %v18
  %v52 = vunpack.c.l.b16 %v19
  %v53 = vunpack.c.l.b16 %v20
  %v54 = vunpack.c.l.b16 %v21
  %v55 = vunpack.c.l.b16 %v22
  %v56 = vunpack.c.l.b16 %v23
  %v57 = vunpack.c.l.b16 %v24
  %v58 = vunpack.c.l.b16 %v25
  %v59 = vunpack.c.l.b16 %v26
  %v60 = vunpack.c.l.b16 %v27
  %v61 = vunpack.c.l.b16 %v28
  %v62 = vpack.c.b16 %v51, %v50
  %v63 = vpack.c.b16 %v53, %v52
  %v64 = vpack.c.b16 %v55, %v54
  %v65 = vpack.c.b16 %v57, %v56
  %v66 = vpack.c.b16 %v59, %v58
  %v67 = vpack.c.b16 %v61, %v60
  %vm74 = vcmask 785408
  %v76 = vsel %vm74, %v37, 0
  %78 = vmatpush.bf16.msra.mxu0 0
  %79 = vmatpush.bf16.msra.mxu0 0
  %80 = vmatpush.bf16.msra.mxu0 %v67
  %81 = vmatpush.bf16.msra.mxu0 %v66
  %82 = vmatpush.bf16.msra.mxu0 %v65
  %83 = vmatpush.bf16.msra.mxu0 %v64
  %84 = vmatpush.bf16.msra.mxu0 %v63
  %85 = vmatpush.bf16.msra.mxu0 %v62
  %86 = vmatmul.bf16.gmra.mxu0 %v76
  %v87 = vpop.f32.mrf.mxu0
  %v88 = vadd.f32 %v31, %v87
  %v89 = vpop.f32.mrf.mxu0
  %v90 = vadd.f32 %v31, %v89
  %91 = vdwg.mxu0
  %v92 = vmax.f32 %v88, 0.0
  %v93 = vmax.f32 %v90, 0.0
  %v94 = vadd.f32 %v92, 1e-09
  %v95 = vadd.f32 %v93, 1e-09
  %v96 = vmul.f32 %v94, %v94
  %v97 = vmul.f32 %v95, %v95
  %98 = vadd.xlane.f32.xlu0 %v96
  %v99 = vpop.xlane.xlu0 %98
  %100 = vadd.xlane.f32.xlu0 %v97
  %v101 = vpop.xlane.xlu0 %100
  %v102 = vmax.f32 %v99, 1e-20
  %v103 = vmax.f32 %v101, 1e-20
  %v104 = vrsqrt.pop %v102
  %v105 = vmul.f32 %v104, %v102
  %v106 = vmul.f32 %v105, %v104
  %v107 = vmul.f32 0.5, %v106
  %v108 = vsub.f32 1.5, %v107
  %v109 = vmul.f32 %v104, %v108
  %vm110 = vweird.f32 %v102
  %vm111 = vweird.f32 %v104
  %vm112 = vmor %vm110, %vm111
  %v113 = vsel %vm112, %v104, %v109
  %v114 = vrsqrt.pop %v103
  %v115 = vmul.f32 %v114, %v103
  %v116 = vmul.f32 %v115, %v114
  %v117 = vmul.f32 0.5, %v116
  %v118 = vsub.f32 1.5, %v117
  %v119 = vmul.f32 %v114, %v118
  %vm120 = vweird.f32 %v103
  %vm121 = vweird.f32 %v114
  %vm122 = vmor %vm120, %vm121
  %v123 = vsel %vm122, %v114, %v119
  %v124 = vmul.f32 %v94, %v113
  %v125 = vmul.f32 %v95, %v123
  %v126 = vpack.c.bf16 %v124, %v124
  %v127 = vpack.c.bf16 %v125, %v125
  %128 = vst [vmem:[%s3] sm:$0xf] %v126
  %129 = vst [vmem:[%s3 + $0x4] sm:$0xf] %v127
  %s130 = scalar_lea.vmem %s1, 48
  %v131 = vld [vmem:[%s130] sm:$0xf]
  %v132 = vld [vmem:[%s130 + $0x4] sm:$0xf]
  %v133 = vld [vmem:[%s130 + $0x8] sm:$0xf]
  %v134 = vld [vmem:[%s130 + $0xc] sm:$0xf]
  %v135 = vld [vmem:[%s130 + $0x10] sm:$0xf]
  %v136 = vld [vmem:[%s130 + $0x14] sm:$0xf]
  %v137 = vld [vmem:[%s130 + $0x18] sm:$0xf]
  %v138 = vld [vmem:[%s130 + $0x1c] sm:$0xf]
  %v139 = vld [vmem:[%s130 + $0x20] sm:$0xf]
  %v140 = vld [vmem:[%s130 + $0x24] sm:$0xf]
  %v141 = vld [vmem:[%s130 + $0x28] sm:$0xf]
  %v142 = vld [vmem:[%s130 + $0x2c] sm:$0xf]
  %s143 = scalar_lea.vmem %s2, 1
  %v144 = vld [vmem:[%s143] sm:$0x1]
  %v146 = vperm.slane %v144, 0
  %v160 = vunpack.c.l.b16 %v131
  %v161 = vunpack.c.l.b16 %v132
  %v162 = vunpack.c.l.b16 %v133
  %v163 = vunpack.c.l.b16 %v134
  %v164 = vunpack.c.l.b16 %v135
  %v165 = vunpack.c.l.b16 %v136
  %v166 = vunpack.c.l.b16 %v137
  %v167 = vunpack.c.l.b16 %v138
  %v168 = vunpack.c.l.b16 %v139
  %v169 = vunpack.c.l.b16 %v140
  %v170 = vunpack.c.l.b16 %v141
  %v171 = vunpack.c.l.b16 %v142
  %v172 = vpack.c.b16 %v161, %v160
  %v173 = vpack.c.b16 %v163, %v162
  %v174 = vpack.c.b16 %v165, %v164
  %v175 = vpack.c.b16 %v167, %v166
  %v176 = vpack.c.b16 %v169, %v168
  %v177 = vpack.c.b16 %v171, %v170
  %184 = vmatpush.bf16.msra.mxu0 0
  %185 = vmatpush.bf16.msra.mxu0 0
  %186 = vmatpush.bf16.msra.mxu0 %v177
  %187 = vmatpush.bf16.msra.mxu0 %v176
  %188 = vmatpush.bf16.msra.mxu0 %v175
  %189 = vmatpush.bf16.msra.mxu0 %v174
  %190 = vmatpush.bf16.msra.mxu0 %v173
  %191 = vmatpush.bf16.msra.mxu0 %v172
  %192 = vmatmul.bf16.gmra.mxu0 %v76
  %v193 = vpop.f32.mrf.mxu0
  %v194 = vadd.f32 %v146, %v193
  %v195 = vpop.f32.mrf.mxu0
  %v196 = vadd.f32 %v146, %v195
  %197 = vdwg.mxu0
  %v198 = vmax.f32 %v194, 0.0
  %v199 = vmax.f32 %v196, 0.0
  %v200 = vadd.f32 %v198, 1e-09
  %v201 = vadd.f32 %v199, 1e-09
  %v202 = vmul.f32 %v200, %v200
  %v203 = vmul.f32 %v201, %v201
  %204 = vadd.xlane.f32.xlu0 %v202
  %v205 = vpop.xlane.xlu0 %204
  %206 = vadd.xlane.f32.xlu0 %v203
  %v207 = vpop.xlane.xlu0 %206
  %v208 = vmax.f32 %v205, 1e-20
  %v209 = vmax.f32 %v207, 1e-20
  %v210 = vrsqrt.pop %v208
  %v211 = vmul.f32 %v210, %v208
  %v212 = vmul.f32 %v211, %v210
  %v213 = vmul.f32 0.5, %v212
  %v214 = vsub.f32 1.5, %v213
  %v215 = vmul.f32 %v210, %v214
  %vm216 = vweird.f32 %v208
  %vm217 = vweird.f32 %v210
  %vm218 = vmor %vm216, %vm217
  %v219 = vsel %vm218, %v210, %v215
  %v220 = vrsqrt.pop %v209
  %v221 = vmul.f32 %v220, %v209
  %v222 = vmul.f32 %v221, %v220
  %v223 = vmul.f32 0.5, %v222
  %v224 = vsub.f32 1.5, %v223
  %v225 = vmul.f32 %v220, %v224
  %vm226 = vweird.f32 %v209
  %vm227 = vweird.f32 %v220
  %vm228 = vmor %vm226, %vm227
  %v229 = vsel %vm228, %v220, %v225
  %v230 = vmul.f32 %v200, %v219
  %v231 = vmul.f32 %v201, %v229
  %v232 = vpack.c.bf16 %v230, %v230
  %v233 = vpack.c.bf16 %v231, %v231
  %s234 = scalar_lea.vmem %s3, 8
  %235 = vst [vmem:[%s234] sm:$0xf] %v232
  %236 = vst [vmem:[%s234 + $0x4] sm:$0xf] %v233
  %s237 = scalar_lea.vmem %s1, 96
  %v238 = vld [vmem:[%s237] sm:$0xf]
  %v239 = vld [vmem:[%s237 + $0x4] sm:$0xf]
  %v240 = vld [vmem:[%s237 + $0x8] sm:$0xf]
  %v241 = vld [vmem:[%s237 + $0xc] sm:$0xf]
  %v242 = vld [vmem:[%s237 + $0x10] sm:$0xf]
  %v243 = vld [vmem:[%s237 + $0x14] sm:$0xf]
  %v244 = vld [vmem:[%s237 + $0x18] sm:$0xf]
  %v245 = vld [vmem:[%s237 + $0x1c] sm:$0xf]
  %v246 = vld [vmem:[%s237 + $0x20] sm:$0xf]
  %v247 = vld [vmem:[%s237 + $0x24] sm:$0xf]
  %v248 = vld [vmem:[%s237 + $0x28] sm:$0xf]
  %v249 = vld [vmem:[%s237 + $0x2c] sm:$0xf]
  %s250 = scalar_lea.vmem %s2, 2
  %v251 = vld [vmem:[%s250] sm:$0x1]
  %v253 = vperm.slane %v251, 0
  %v267 = vunpack.c.l.b16 %v238
  %v268 = vunpack.c.l.b16 %v239
  %v269 = vunpack.c.l.b16 %v240
  %v270 = vunpack.c.l.b16 %v241
  %v271 = vunpack.c.l.b16 %v242
  %v272 = vunpack.c.l.b16 %v243
  %v273 = vunpack.c.l.b16 %v244
  %v274 = vunpack.c.l.b16 %v245
  %v275 = vunpack.c.l.b16 %v246
  %v276 = vunpack.c.l.b16 %v247
  %v277 = vunpack.c.l.b16 %v248
  %v278 = vunpack.c.l.b16 %v249
  %v279 = vpack.c.b16 %v268, %v267
  %v280 = vpack.c.b16 %v270, %v269
  %v281 = vpack.c.b16 %v272, %v271
  %v282 = vpack.c.b16 %v274, %v273
  %v283 = vpack.c.b16 %v276, %v275
  %v284 = vpack.c.b16 %v278, %v277
  %291 = vmatpush.bf16.msra.mxu0 0
  %292 = vmatpush.bf16.msra.mxu0 0
  %293 = vmatpush.bf16.msra.mxu0 %v284
  %294 = vmatpush.bf16.msra.mxu0 %v283
  %295 = vmatpush.bf16.msra.mxu0 %v282
  %296 = vmatpush.bf16.msra.mxu0 %v281
  %297 = vmatpush.bf16.msra.mxu0 %v280
  %298 = vmatpush.bf16.msra.mxu0 %v279
  %299 = vmatmul.bf16.gmra.mxu0 %v76
  %v300 = vpop.f32.mrf.mxu0
  %v301 = vadd.f32 %v253, %v300
  %v302 = vpop.f32.mrf.mxu0
  %v303 = vadd.f32 %v253, %v302
  %304 = vdwg.mxu0
  %v305 = vmax.f32 %v301, 0.0
  %v306 = vmax.f32 %v303, 0.0
  %v307 = vadd.f32 %v305, 1e-09
  %v308 = vadd.f32 %v306, 1e-09
  %v309 = vmul.f32 %v307, %v307
  %v310 = vmul.f32 %v308, %v308
  %311 = vadd.xlane.f32.xlu0 %v309
  %v312 = vpop.xlane.xlu0 %311
  %313 = vadd.xlane.f32.xlu0 %v310
  %v314 = vpop.xlane.xlu0 %313
  %v315 = vmax.f32 %v312, 1e-20
  %v316 = vmax.f32 %v314, 1e-20
  %v317 = vrsqrt.pop %v315
  %v318 = vmul.f32 %v317, %v315
  %v319 = vmul.f32 %v318, %v317
  %v320 = vmul.f32 0.5, %v319
  %v321 = vsub.f32 1.5, %v320
  %v322 = vmul.f32 %v317, %v321
  %vm323 = vweird.f32 %v315
  %vm324 = vweird.f32 %v317
  %vm325 = vmor %vm323, %vm324
  %v326 = vsel %vm325, %v317, %v322
  %v327 = vrsqrt.pop %v316
  %v328 = vmul.f32 %v327, %v316
  %v329 = vmul.f32 %v328, %v327
  %v330 = vmul.f32 0.5, %v329
  %v331 = vsub.f32 1.5, %v330
  %v332 = vmul.f32 %v327, %v331
  %vm333 = vweird.f32 %v316
  %vm334 = vweird.f32 %v327
  %vm335 = vmor %vm333, %vm334
  %v336 = vsel %vm335, %v327, %v332
  %v337 = vmul.f32 %v307, %v326
  %v338 = vmul.f32 %v308, %v336
  %v339 = vpack.c.bf16 %v337, %v337
  %v340 = vpack.c.bf16 %v338, %v338
  %s341 = scalar_lea.vmem %s3, 16
  %342 = vst [vmem:[%s341] sm:$0xf] %v339
  %343 = vst [vmem:[%s341 + $0x4] sm:$0xf] %v340
  // Predicated region
  $region14: #{convknrm_forward.3} parent=0 // pred_check
    _
  $region15: #{convknrm_forward.3} parent=0 // pred_check_branch
    %345 = sbr.rel (0) target = $region17
  $region16: #{convknrm_forward.3} parent=0 // pred_region
    _
  $region17: #{convknrm_forward.3} parent=0 // pred_fallthru
    _
  // Predicated region
  $region18: #{convknrm_forward.3} parent=0 // pred_check
    _
  $region19: #{convknrm_forward.3} parent=0 // pred_check_branch
    %347 = sbr.rel (0) target = $region21
  $region20: #{convknrm_forward.3} parent=0 // pred_region
    _
  $region21: #{convknrm_forward.3} parent=0 // pred_fallthru
    _

// kernel: convknrm_forward.5
$region0: #{convknrm_forward.5}
  #allocation0 [shape = 'u32[]', space=smem, size = 0x4, offset = 0x4, fixed_abs, tag = 'smem constant byte address 0x4 - core index']
  #allocation1 [shape = 'u32[72,128]{1,0:T(1,128)}', space=vmem, size = 0x9000, scoped, tag = 'internal scratch']
  #allocation2 [shape = 'f32[11,2,8]{2,1,0:T(2,128)}', space=vmem, size = 0x2c00, scoped, tag = 'scratch operand']
  #allocation3 [shape = 's32[1]{0}', space=sflag, size = 0x4, scoped, tag = 'scoped memory for convknrm_forward.5']
  #allocation4 [shape = 'u8[512]{0}', space=smem, size = 0x200, scoped, tag = 'prefetched SMEM operand 0']
  #allocation5 [shape = 'u8[512]{0}', space=smem, size = 0x200, scoped, tag = 'prefetched SMEM operand 1']
  #allocation6 [shape = 'u8[512]{0}', space=smem, size = 0x200, scoped, tag = 'prefetched SMEM operand 2']
  %s0 = inlined_call_operand.vmem [shape: s32[9], index: 0, kind: input, shape index: {}]
  %s1 = inlined_call_operand.vmem [shape: s32[9], index: 1, kind: input, shape index: {}]
  %s2 = inlined_call_operand.vmem [shape: s32[9], index: 2, kind: input, shape index: {}]
  %s3 = inlined_call_operand.vmem [shape: bf16[3,2,8,128], index: 3, kind: input, shape index: {}]
  %s4 = inlined_call_operand.vmem [shape: bf16[3,2,12,128], index: 4, kind: input, shape index: {}]
  %s5 = inlined_call_operand.vmem [shape: f32[9,2,128], index: 5, kind: output, shape index: {}]
  %s6 = sld [smem:[#allocation0]]
  $region49: #{convknrm_forward.5} parent=0
    _
  %s8 = ssub.s32 1, %s6
  %s9 = scalar_select 0, %s8, %s6
  %s11 = sshll.u32 %s0, 4
  %s12 = int_to_ptr.vmem [resolvable:$true] %s11
  %14 = dma.vmem_to_smem %s12, 16, [#allocation4], [#allocation3]
  %s16 = sshll.u32 %s1, 4
  %s17 = int_to_ptr.vmem [resolvable:$true] %s16
  %19 = dma.vmem_to_smem %s17, 16, [#allocation5], [#allocation3]
  %s21 = sshll.u32 %s2, 4
  %s22 = int_to_ptr.vmem [resolvable:$true] %s21
  %24 = dma.vmem_to_smem %s22, 16, [#allocation6], [#allocation3]
  %26 = dma.done [#allocation3], 48
  %27 = sfence
  loop: start=0, step=1, limit=11
  $region2: #{convknrm_forward.5} parent=0 // loop_pre_header
    _
  $region3: #{convknrm_forward.5} parent=0 // loop_header
    %s29 = sphi 0, %s33
    %p30 = scmp.ge.s32.totalorder %s29, 11
    %s36 = sphi 0, %s48
    %s37 = sphi 0, %s44
    %s38 = sphi 0, %s36
    %s39 = sphi 0, %s37
    %s40 = sphi 0, %s38
    %s41 = sphi 0, %s39
    %s53 = sphi 0, %s55
    %s56 = sphi 0, %s53
    %s57 = sphi 0, %s56
    %s73 = sphi 0, %s57
    %s83 = sphi 0, %s85
    %s86 = sphi 0, %s83
    %s87 = sphi 0, %s86
    %s103 = sphi 0, %s87
    %s111 = sphi 0, %s113
    %s114 = sphi 0, %s111
    %s115 = sphi 0, %s114
    %s131 = sphi 0, %s115
  $region4: #{convknrm_forward.5} parent=0 // loop_header_branch
    %32 = sbr.rel (%p30) target = $region8
  $region5: #{convknrm_forward.5} parent=0 // loop_body
    %s34 = ssub.s32 %s29, 1
    %s35 = ssub.s32 %s29, 2
    %s42 = sadd.s32 1, %s37
    %p43 = scmp.ge.s32.totalorder %s42, 1
    %s44 = scalar_select %p43, 0, %s42
    %s45 = sadd.s32 1, %s36
    %s46 = scalar_select %p43, %s45, %s36
    %p47 = scmp.ge.s32.totalorder %s46, 9
    %s48 = scalar_select %p47, 0, %s46
    %s49 = sld [smem:[#allocation4 + %s36]]
    %s50 = sld [smem:[#allocation4 + %s48]]
    %s51 = ssub.s32 %s49, %s50
    %p52 = scmp.eq.s32.totalorder %s51, 0
    %s54 = sadd.s32 %s53, 1
    %s55 = scalar_select %p52, %s53, %s54
    %p58 = pneg %p52
    %p59 = scmp.eq.s32.totalorder %s29, 8
    %p60 = por %p58, %p59
    %p61 = scmp.ne.s32.totalorder %s53, %s56
    %p62 = scmp.eq.s32.totalorder %s29, 0
    %p63 = por %p61, %p62
    %p64 = scmp.ne.s32.totalorder %s53, %s56
    %p65 = scmp.eq.s32.totalorder %s34, 8
    %p66 = por %p64, %p65
    %p67 = scmp.ne.s32.totalorder %s56, %s57
    %p68 = scmp.eq.s32.totalorder %s34, 0
    %p69 = por %p67, %p68
    %p70 = scmp.ne.s32.totalorder %s56, %s57
    %p71 = scmp.eq.s32.totalorder %s35, 8
    %p72 = por %p70, %p71
    %p74 = scmp.ne.s32.totalorder %s57, %s73
    %p75 = scmp.eq.s32.totalorder %s35, 0
    %p76 = por %p74, %p75
    %s77 = sld [smem:[#allocation5 + %s36]]
    %s78 = sld [smem:[#allocation5 + %s48]]
    %s79 = ssub.s32 %s77, %s78
    %s80 = ssub.s32 %s37, %s44
    %s81 = sor.u32 %s79, %s80
    %p82 = scmp.eq.s32.totalorder %s81, 0
    %s84 = sadd.s32 %s83, 1
    %s85 = scalar_select %p82, %s83, %s84
    %p88 = pneg %p82
    %p89 = scmp.eq.s32.totalorder %s29, 8
    %p90 = por %p88, %p89
    %p91 = scmp.ne.s32.totalorder %s83, %s86
    %p92 = scmp.eq.s32.totalorder %s29, 0
    %p93 = por %p91, %p92
    %p94 = scmp.ne.s32.totalorder %s83, %s86
    %p95 = scmp.eq.s32.totalorder %s34, 8
    %p96 = por %p94, %p95
    %p97 = scmp.ne.s32.totalorder %s86, %s87
    %p98 = scmp.eq.s32.totalorder %s34, 0
    %p99 = por %p97, %p98
    %p100 = scmp.ne.s32.totalorder %s86, %s87
    %p101 = scmp.eq.s32.totalorder %s35, 8
    %p102 = por %p100, %p101
    %p104 = scmp.ne.s32.totalorder %s87, %s103
    %p105 = scmp.eq.s32.totalorder %s35, 0
    %p106 = por %p104, %p105
    %s107 = sld [smem:[#allocation6 + %s36]]
    %s108 = sld [smem:[#allocation6 + %s48]]
    %s109 = ssub.s32 %s107, %s108
    %p110 = scmp.eq.s32.totalorder %s109, 0
    %s112 = sadd.s32 %s111, 1
    %s113 = scalar_select %p110, %s111, %s112
    %p116 = pneg %p110
    %p117 = scmp.eq.s32.totalorder %s29, 8
    %p118 = por %p116, %p117
    %p119 = scmp.ne.s32.totalorder %s111, %s114
    %p120 = scmp.eq.s32.totalorder %s29, 0
    %p121 = por %p119, %p120
    %p122 = scmp.ne.s32.totalorder %s111, %s114
    %p123 = scmp.eq.s32.totalorder %s34, 8
    %p124 = por %p122, %p123
    %p125 = scmp.ne.s32.totalorder %s114, %s115
    %p126 = scmp.eq.s32.totalorder %s34, 0
    %p127 = por %p125, %p126
    %p128 = scmp.ne.s32.totalorder %s114, %s115
    %p129 = scmp.eq.s32.totalorder %s35, 8
    %p130 = por %p128, %p129
    %p132 = scmp.ne.s32.totalorder %s115, %s131
    %p133 = scmp.eq.s32.totalorder %s35, 0
    %p134 = por %p132, %p133
    %p135 = scmp.le.s32.totalorder 1, %s29
    %p136 = scmp.lt.s32.totalorder %s29, 10
    %p137 = pnand %p135, %p136
    %p138 = pneg %p137
    // Predicated region
    $region9: #{convknrm_forward.5} parent=5 // pred_check
      _
    $region10: #{convknrm_forward.5} parent=5 // pred_check_branch
      %140 = sbr.rel (%p137) target = $region12
    $region11: #{convknrm_forward.5} parent=5 // pred_region
      %s141 = ssub.s32 %s29, 1
    $region12: #{convknrm_forward.5} parent=5 // pred_fallthru
      _
    %p142 = scmp.lt.s32.totalorder %s29, 9
    // Predicated region
    $region13: #{convknrm_forward.5} parent=5 // pred_check
      %p143 = pneg %p142
    $region14: #{convknrm_forward.5} parent=5 // pred_check_branch
      %145 = sbr.rel (%p143) target = $region16
    $region15: #{convknrm_forward.5} parent=5 // pred_region
      // Predicated region
      $region17: #{convknrm_forward.5} parent=15 // pred_check
        %p146 = pneg %p63
      $region18: #{convknrm_forward.5} parent=15 // pred_check_branch
        %148 = sbr.rel (%p146) target = $region20
      $region19: #{convknrm_forward.5} parent=15 // pred_region
        %s149 = sld [smem:[#allocation4 + %s36]]
        %p150 = scmp.lt.s32.totalorder %s149, 2
        %s151 = scalar_select %p150, %s149, 2
        %s152 = smul.addr %s151, 2
        %s153 = smul.addr %s152, 4
        %s154 = scalar_lea.vmem %s3, %s153
        %s155 = sld [smem:[#allocation4 + %s36]]
      $region20: #{convknrm_forward.5} parent=15 // pred_fallthru
        _
      // Predicated region
      $region21: #{convknrm_forward.5} parent=15 // pred_check
        %p156 = pneg %p93
      $region22: #{convknrm_forward.5} parent=15 // pred_check_branch
        %158 = sbr.rel (%p156) target = $region24
      $region23: #{convknrm_forward.5} parent=15 // pred_region
        %s159 = sld [smem:[#allocation5 + %s36]]
        %s160 = smul.u32 2, %s37
        %p161 = scmp.lt.s32.totalorder %s159, 2
        %s162 = scalar_select %p161, %s159, 2
        %p163 = scmp.lt.s32.totalorder %s160, 1
        %s164 = scalar_select %p163, %s160, 1
        %s165 = smul.addr %s162, 4
        %s166 = sadd.s32 %s164, %s165
        %s167 = smul.addr %s166, 4
        %s168 = scalar_lea.vmem %s4, %s167
        %s169 = sld [smem:[#allocation5 + %s36]]
        %s170 = smul.u32 2, %s37
      $region24: #{convknrm_forward.5} parent=15 // pred_fallthru
        _
    $region16: #{convknrm_forward.5} parent=5 // pred_fallthru
      _
    %p171 = scmp.le.s32.totalorder 1, %s29
    %p172 = scmp.lt.s32.totalorder %s29, 10
    %p173 = pnand %p171, %p172
    %p174 = pneg %p173
    // Predicated region
    $region25: #{convknrm_forward.5} parent=5 // pred_check
      _
    $region26: #{convknrm_forward.5} parent=5 // pred_check_branch
      %176 = sbr.rel (%p173) target = $region28
    $region27: #{convknrm_forward.5} parent=5 // pred_region
      %s177 = ssub.s32 %s29, 1
      %s178 = sld [smem:[#allocation4 + %s38]]
      %p179 = scmp.lt.s32.totalorder %s178, 2
      %s180 = scalar_select %p179, %s178, 2
      %s181 = smul.addr %s180, 2
      %s182 = smul.addr %s181, 4
      %s183 = scalar_lea.vmem %s3, %s182
      %p184 = pneg %p69
      %p185 = pneg %p66
      %s186 = sld [smem:[#allocation5 + %s38]]
      %s187 = smul.u32 2, %s39
      %p188 = scmp.lt.s32.totalorder %s186, 2
      %s189 = scalar_select %p188, %s186, 2
      %p190 = scmp.lt.s32.totalorder %s187, 1
      %s191 = scalar_select %p190, %s187, 1
      %s192 = smul.addr %s189, 4
      %s193 = sadd.s32 %s191, %s192
      %s194 = smul.addr %s193, 4
      %s195 = scalar_lea.vmem %s4, %s194
      %p196 = pneg %p99
      %p197 = pneg %p96
      %p198 = pneg %p127
      %p199 = pneg %p124
      %s200 = sld [smem:[#allocation6 + %s38]]
      %p201 = scmp.lt.s32.totalorder %s200, 8
      %s202 = scalar_select %p201, %s200, 8
      %s203 = smul.addr %s202, 2
      %s204 = scalar_lea.vmem %s5, %s203
      %s205 = sld [smem:[#allocation4 + %s38]]
      %p206 = scmp.lt.s32.totalorder %s205, 2
      %s207 = scalar_select %p206, %s205, 2
      %s208 = smul.addr %s207, 2
      %s209 = smul.addr %s208, 4
      %s210 = scalar_lea.vmem %s3, %s209
      %s211 = sld [smem:[#allocation4 + %s38]]
      %s212 = sld [smem:[#allocation5 + %s38]]
      %s213 = smul.u32 2, %s39
      %p214 = scmp.lt.s32.totalorder %s212, 2
      %s215 = scalar_select %p214, %s212, 2
      %p216 = scmp.lt.s32.totalorder %s213, 1
      %s217 = scalar_select %p216, %s213, 1
      %s218 = smul.addr %s215, 4
      %s219 = sadd.s32 %s217, %s218
      %s220 = smul.addr %s219, 4
      %s221 = scalar_lea.vmem %s4, %s220
      %s222 = sld [smem:[#allocation5 + %s38]]
      %s223 = smul.u32 2, %s39
      %s224 = sld [smem:[#allocation6 + %s38]]
      %p225 = scmp.lt.s32.totalorder %s224, 8
      %s226 = scalar_select %p225, %s224, 8
      %s227 = smul.addr %s226, 2
      %s228 = scalar_lea.vmem %s5, %s227
      %s229 = sld [smem:[#allocation6 + %s38]]
      %p231 = scmp.eq.s32.totalorder %s39, 0
      // Predicated region
      $region29: #{convknrm_forward.5} parent=27 // pred_check
        %p232 = pneg %p231
      $region30: #{convknrm_forward.5} parent=27 // pred_check_branch
        %234 = sbr.rel (%p232) target = $region32
      $region31: #{convknrm_forward.5} parent=27 // pred_region
        %vm235 = vcmask 58368
        %236 = vst.msk [vmem:[#allocation2] sm:$0x3] %vm235, 0.0
        %237 = vst.msk [vmem:[#allocation2 + $0x2] sm:$0x3] %vm235, 0.0
        %238 = vst.msk [vmem:[#allocation2 + $0x4] sm:$0x3] %vm235, 0.0
        %239 = vst.msk [vmem:[#allocation2 + $0x6] sm:$0x3] %vm235, 0.0
        %240 = vst.msk [vmem:[#allocation2 + $0x8] sm:$0x3] %vm235, 0.0
        %241 = vst.msk [vmem:[#allocation2 + $0xa] sm:$0x3] %vm235, 0.0
        %242 = vst.msk [vmem:[#allocation2 + $0xc] sm:$0x3] %vm235, 0.0
        %243 = vst.msk [vmem:[#allocation2 + $0xe] sm:$0x3] %vm235, 0.0
        %244 = vst.msk [vmem:[#allocation2 + $0x10] sm:$0x3] %vm235, 0.0
        %245 = vst.msk [vmem:[#allocation2 + $0x12] sm:$0x3] %vm235, 0.0
        %246 = vst.msk [vmem:[#allocation2 + $0x14] sm:$0x3] %vm235, 0.0
      $region32: #{convknrm_forward.5} parent=27 // pred_fallthru
        _
      %v247 = vld [vmem:[%s210] sm:$0xf]
      %v248 = vld [vmem:[%s210 + $0x4] sm:$0xf]
      %v249 = vld [vmem:[%s221] sm:$0xf]
      %v250 = vld [vmem:[%s221 + $0x4] sm:$0x3]
      %v251 = vld [vmem:[%s221 + $0x8] sm:$0xf]
      %v252 = vld [vmem:[%s221 + $0xc] sm:$0x3]
      %v255 = vunpack.c.l.b16 %v249
      %v256 = vunpack.c.l.b16 %v250
      %v257 = vpack.c.b16 %v256, %v255
      %259 = vmatpush.bf16.xpose.msra.mxu0 0
      %260 = vmatpush.bf16.xpose.msra.mxu0 0
      %261 = vmatpush.bf16.xpose.msra.mxu0 0
      %262 = vmatpush.bf16.xpose.msra.mxu0 0
      %263 = vmatpush.bf16.xpose.msra.mxu0 0
      %264 = vmatpush.bf16.xpose.msra.mxu0 0
      %265 = vmatpush.bf16.xpose.msra.mxu0 0
      %266 = vmatpush.bf16.xpose.msra.mxu0 %v257
      %267 = vmatmul.bf16.gmra.mxu0 %v247
      %v268 = vpop.f32.mrf.mxu0
      %v269 = vadd.f32 0.0, %v268
      %v270 = vpop.f32.mrf.mxu0
      %271 = vdwg.mxu0
      %v274 = vunpack.c.l.b16 %v251
      %v275 = vunpack.c.l.b16 %v252
      %v276 = vpack.c.b16 %v275, %v274
      %278 = vmatpush.bf16.xpose.msra.mxu0 0
      %279 = vmatpush.bf16.xpose.msra.mxu0 0
      %280 = vmatpush.bf16.xpose.msra.mxu0 0
      %281 = vmatpush.bf16.xpose.msra.mxu0 0
      %282 = vmatpush.bf16.xpose.msra.mxu0 0
      %283 = vmatpush.bf16.xpose.msra.mxu0 0
      %284 = vmatpush.bf16.xpose.msra.mxu0 0
      %285 = vmatpush.bf16.xpose.msra.mxu0 %v276
      %286 = vmatmul.bf16.gmra.mxu0 %v248
      %v287 = vpop.f32.mrf.mxu0
      %v288 = vadd.f32 0.0, %v287
      %v289 = vpop.f32.mrf.mxu0
      %290 = vdwg.mxu0
      %s291 = sld [smem:[#allocation5 + %s38]]
      %s292 = ssub.s32 12, %s291
      %s293 = smul.u32 %s39, 12
      %v294 = vlaneseq
      %v295 = vand.u32 %v294, 127
      %v296 = vstv %s293
      %v297 = vadd.s32 %v296, %v295
      %v298 = vstv %s292
      %vm299 = vcmp.lt.s32.totalorder %v297, %v298
      %v300 = vsel %vm299, 1, 0
      %vm301 = vcmp.eq.s32.totalorder %v300, 1
      %v302 = vsel %vm301, %v269, -10000.0
      %v303 = vsel %vm301, %v288, -10000.0
      %v304 = vsub.f32 %v302, 1.0
      %v305 = vsub.f32 %v303, 1.0
      %v306 = vmul.f32 %v304, %v304
      %v307 = vmul.f32 %v305, %v305
      %v308 = vsub.f32 0.0, %v306
      %v309 = vsub.f32 0.0, %v307
      %v310 = vmul.f32 %v308, 500000.0
      %v311 = vmul.f32 %v309, 500000.0
      %v312 = vpack.c.bf16 %v310, %v310
      %v313 = vpack.c.bf16 %v311, %v311
      %v314 = vunpack.c.l.bf16 %v312
      %v315 = vunpack.c.l.bf16 %v313
      %v316 = vmul.f32 %v314, 1.442695
      %v317 = vpow.pop %v316
      %v318 = vmul.f32 %v315, 1.442695
      %v319 = vpow.pop %v318
      %v320 = vpack.c.bf16 %v317, %v317
      %v321 = vpack.c.bf16 %v319, %v319
      %v322 = vld [vmem:[#allocation2] sm:$0x3]
      %v323 = vunpack.c.l.bf16 %v320
      %v324 = vunpack.c.l.bf16 %v321
      %vm325 = vcmask 97280
      %v326 = vsel %vm325, %v323, 0.0
      %327 = vadd.xlane.f32.xlu0 %v326
      %v328 = vpop.xlane.xlu0 %327
      %v329 = vsel %vm325, %v324, 0.0
      %330 = vadd.xlane.f32.xlu0 %v329
      %v331 = vpop.xlane.xlu0 %330
      %v334 = vperm.slane %v328, %v295
      %v335 = vperm.slane %v331, %v295
      %vm336 = vcmask 1041409
      %v337 = vsel %vm336, %v335, %v334
      %v339 = vadd.f32 %v322, %v337
      %vm340 = vcmask 58368
      %341 = vst.msk [vmem:[#allocation2] sm:$0x3] %vm340, %v339
      %v342 = vsub.f32 %v302, 0.9
      %v343 = vsub.f32 %v303, 0.9
      %v344 = vmul.f32 %v342, %v342
      %v345 = vmul.f32 %v343, %v343
      %v346 = vsub.f32 0.0, %v344
      %v347 = vsub.f32 0.0, %v345
      %v348 = vmul.f32 %v346, 50.0
      %v349 = vmul.f32 %v347, 50.0
      %v350 = vpack.c.bf16 %v348, %v348
      %v351 = vpack.c.bf16 %v349, %v349
      %v352 = vunpack.c.l.bf16 %v350
      %v353 = vunpack.c.l.bf16 %v351
      %v354 = vmul.f32 %v352, 1.442695
      %v355 = vpow.pop %v354
      %v356 = vmul.f32 %v353, 1.442695
      %v357 = vpow.pop %v356
      %v358 = vpack.c.bf16 %v355, %v355
      %v359 = vpack.c.bf16 %v357, %v357
      %s360 = scalar_lea.vmem [#allocation2], 2
      %v361 = vld [vmem:[%s360] sm:$0x3]
      %v362 = vunpack.c.l.bf16 %v358
      %v363 = vunpack.c.l.bf16 %v359
      %v364 = vsel %vm325, %v362, 0.0
      %365 = vadd.xlane.f32.xlu0 %v364
      %v366 = vpop.xlane.xlu0 %365
      %v367 = vsel %vm325, %v363, 0.0
      %368 = vadd.xlane.f32.xlu0 %v367
      %v369 = vpop.xlane.xlu0 %368
      %v372 = vperm.slane %v366, %v295
      %v373 = vperm.slane %v369, %v295
      %v374 = vsel %vm336, %v373, %v372
      %v376 = vadd.f32 %v361, %v374
      %377 = vst.msk [vmem:[%s360] sm:$0x3] %vm340, %v376
      %v378 = vsub.f32 %v302, 0.7
      %v379 = vsub.f32 %v303, 0.7
      %v380 = vmul.f32 %v378, %v378
      %v381 = vmul.f32 %v379, %v379
      %v382 = vsub.f32 0.0, %v380
      %v383 = vsub.f32 0.0, %v381
      %v384 = vmul.f32 %v382, 50.0
      %v385 = vmul.f32 %v383, 50.0
      %v386 = vpack.c.bf16 %v384, %v384
      %v387 = vpack.c.bf16 %v385, %v385
      %v388 = vunpack.c.l.bf16 %v386
      %v389 = vunpack.c.l.bf16 %v387
      %v390 = vmul.f32 %v388, 1.442695
      %v391 = vpow.pop %v390
      %v392 = vmul.f32 %v389, 1.442695
      %v393 = vpow.pop %v392
      %v394 = vpack.c.bf16 %v391, %v391
      %v395 = vpack.c.bf16 %v393, %v393
      %s396 = scalar_lea.vmem [#allocation2], 4
      %v397 = vld [vmem:[%s396] sm:$0x3]
      %v398 = vunpack.c.l.bf16 %v394
      %v399 = vunpack.c.l.bf16 %v395
      %v400 = vsel %vm325, %v398, 0.0
      %401 = vadd.xlane.f32.xlu0 %v400
      %v402 = vpop.xlane.xlu0 %401
      %v403 = vsel %vm325, %v399, 0.0
      %404 = vadd.xlane.f32.xlu0 %v403
      %v405 = vpop.xlane.xlu0 %404
      %v408 = vperm.slane %v402, %v295
      %v409 = vperm.slane %v405, %v295
      %v410 = vsel %vm336, %v409, %v408
      %v412 = vadd.f32 %v397, %v410
      %413 = vst.msk [vmem:[%s396] sm:$0x3] %vm340, %v412
      %v414 = vsub.f32 %v302, 0.5
      %v415 = vsub.f32 %v303, 0.5
      %v416 = vmul.f32 %v414, %v414
      %v417 = vmul.f32 %v415, %v415
      %v418 = vsub.f32 0.0, %v416
      %v419 = vsub.f32 0.0, %v417
      %v420 = vmul.f32 %v418, 50.0
      %v421 = vmul.f32 %v419, 50.0
      %v422 = vpack.c.bf16 %v420, %v420
      %v423 = vpack.c.bf16 %v421, %v421
      %v424 = vunpack.c.l.bf16 %v422
      %v425 = vunpack.c.l.bf16 %v423
      %v426 = vmul.f32 %v424, 1.442695
      %v427 = vpow.pop %v426
      %v428 = vmul.f32 %v425, 1.442695
      %v429 = vpow.pop %v428
      %v430 = vpack.c.bf16 %v427, %v427
      %v431 = vpack.c.bf16 %v429, %v429
      %s432 = scalar_lea.vmem [#allocation2], 6
      %v433 = vld [vmem:[%s432] sm:$0x3]
      %v434 = vunpack.c.l.bf16 %v430
      %v435 = vunpack.c.l.bf16 %v431
      %v436 = vsel %vm325, %v434, 0.0
      %437 = vadd.xlane.f32.xlu0 %v436
      %v438 = vpop.xlane.xlu0 %437
      %v439 = vsel %vm325, %v435, 0.0
      %440 = vadd.xlane.f32.xlu0 %v439
      %v441 = vpop.xlane.xlu0 %440
      %v444 = vperm.slane %v438, %v295
      %v445 = vperm.slane %v441, %v295
      %v446 = vsel %vm336, %v445, %v444
      %v448 = vadd.f32 %v433, %v446
      %449 = vst.msk [vmem:[%s432] sm:$0x3] %vm340, %v448
      %v450 = vsub.f32 %v302, 0.3
      %v451 = vsub.f32 %v303, 0.3
      %v452 = vmul.f32 %v450, %v450
      %v453 = vmul.f32 %v451, %v451
      %v454 = vsub.f32 0.0, %v452
      %v455 = vsub.f32 0.0, %v453
      %v456 = vmul.f32 %v454, 50.0
      %v457 = vmul.f32 %v455, 50.0
      %v458 = vpack.c.bf16 %v456, %v456
      %v459 = vpack.c.bf16 %v457, %v457
      %v460 = vunpack.c.l.bf16 %v458
      %v461 = vunpack.c.l.bf16 %v459
      %v462 = vmul.f32 %v460, 1.442695
      %v463 = vpow.pop %v462
      %v464 = vmul.f32 %v461, 1.442695
      %v465 = vpow.pop %v464
      %v466 = vpack.c.bf16 %v463, %v463
      %v467 = vpack.c.bf16 %v465, %v465
      %s468 = scalar_lea.vmem [#allocation2], 8
      %v469 = vld [vmem:[%s468] sm:$0x3]
      %v470 = vunpack.c.l.bf16 %v466
      %v471 = vunpack.c.l.bf16 %v467
      %v472 = vsel %vm325, %v470, 0.0
      %473 = vadd.xlane.f32.xlu0 %v472
      %v474 = vpop.xlane.xlu0 %473
      %v475 = vsel %vm325, %v471, 0.0
      %476 = vadd.xlane.f32.xlu0 %v475
      %v477 = vpop.xlane.xlu0 %476
      %v480 = vperm.slane %v474, %v295
      %v481 = vperm.slane %v477, %v295
      %v482 = vsel %vm336, %v481, %v480
      %v484 = vadd.f32 %v469, %v482
      %485 = vst.msk [vmem:[%s468] sm:$0x3] %vm340, %v484
      %v486 = vsub.f32 %v302, 0.1
      %v487 = vsub.f32 %v303, 0.1
      %v488 = vmul.f32 %v486, %v486
      %v489 = vmul.f32 %v487, %v487
      %v490 = vsub.f32 0.0, %v488
      %v491 = vsub.f32 0.0, %v489
      %v492 = vmul.f32 %v490, 50.0
      %v493 = vmul.f32 %v491, 50.0
      %v494 = vpack.c.bf16 %v492, %v492
      %v495 = vpack.c.bf16 %v493, %v493
      %v496 = vunpack.c.l.bf16 %v494
      %v497 = vunpack.c.l.bf16 %v495
      %v498 = vmul.f32 %v496, 1.442695
      %v499 = vpow.pop %v498
      %v500 = vmul.f32 %v497, 1.442695
      %v501 = vpow.pop %v500
      %v502 = vpack.c.bf16 %v499, %v499
      %v503 = vpack.c.bf16 %v501, %v501
      %s504 = scalar_lea.vmem [#allocation2], 10
      %v505 = vld [vmem:[%s504] sm:$0x3]
      %v506 = vunpack.c.l.bf16 %v502
      %v507 = vunpack.c.l.bf16 %v503
      %v508 = vsel %vm325, %v506, 0.0
      %509 = vadd.xlane.f32.xlu0 %v508
      %v510 = vpop.xlane.xlu0 %509
      %v511 = vsel %vm325, %v507, 0.0
      %512 = vadd.xlane.f32.xlu0 %v511
      %v513 = vpop.xlane.xlu0 %512
      %v516 = vperm.slane %v510, %v295
      %v517 = vperm.slane %v513, %v295
      %v518 = vsel %vm336, %v517, %v516
      %v520 = vadd.f32 %v505, %v518
      %521 = vst.msk [vmem:[%s504] sm:$0x3] %vm340, %v520
      %v522 = vsub.f32 %v302, -0.1
      %v523 = vsub.f32 %v303, -0.1
      %v524 = vmul.f32 %v522, %v522
      %v525 = vmul.f32 %v523, %v523
      %v526 = vsub.f32 0.0, %v524
      %v527 = vsub.f32 0.0, %v525
      %v528 = vmul.f32 %v526, 50.0
      %v529 = vmul.f32 %v527, 50.0
      %v530 = vpack.c.bf16 %v528, %v528
      %v531 = vpack.c.bf16 %v529, %v529
      %v532 = vunpack.c.l.bf16 %v530
      %v533 = vunpack.c.l.bf16 %v531
      %v534 = vmul.f32 %v532, 1.442695
      %v535 = vpow.pop %v534
      %v536 = vmul.f32 %v533, 1.442695
      %v537 = vpow.pop %v536
      %v538 = vpack.c.bf16 %v535, %v535
      %v539 = vpack.c.bf16 %v537, %v537
      %s540 = scalar_lea.vmem [#allocation2], 12
      %v541 = vld [vmem:[%s540] sm:$0x3]
      %v542 = vunpack.c.l.bf16 %v538
      %v543 = vunpack.c.l.bf16 %v539
      %v544 = vsel %vm325, %v542, 0.0
      %545 = vadd.xlane.f32.xlu0 %v544
      %v546 = vpop.xlane.xlu0 %545
      %v547 = vsel %vm325, %v543, 0.0
      %548 = vadd.xlane.f32.xlu0 %v547
      %v549 = vpop.xlane.xlu0 %548
      %v552 = vperm.slane %v546, %v295
      %v553 = vperm.slane %v549, %v295
      %v554 = vsel %vm336, %v553, %v552
      %v556 = vadd.f32 %v541, %v554
      %557 = vst.msk [vmem:[%s540] sm:$0x3] %vm340, %v556
      %v558 = vsub.f32 %v302, -0.3
      %v559 = vsub.f32 %v303, -0.3
      %v560 = vmul.f32 %v558, %v558
      %v561 = vmul.f32 %v559, %v559
      %v562 = vsub.f32 0.0, %v560
      %v563 = vsub.f32 0.0, %v561
      %v564 = vmul.f32 %v562, 50.0
      %v565 = vmul.f32 %v563, 50.0
      %v566 = vpack.c.bf16 %v564, %v564
      %v567 = vpack.c.bf16 %v565, %v565
      %v568 = vunpack.c.l.bf16 %v566
      %v569 = vunpack.c.l.bf16 %v567
      %v570 = vmul.f32 %v568, 1.442695
      %v571 = vpow.pop %v570
      %v572 = vmul.f32 %v569, 1.442695
      %v573 = vpow.pop %v572
      %v574 = vpack.c.bf16 %v571, %v571
      %v575 = vpack.c.bf16 %v573, %v573
      %s576 = scalar_lea.vmem [#allocation2], 14
      %v577 = vld [vmem:[%s576] sm:$0x3]
      %v578 = vunpack.c.l.bf16 %v574
      %v579 = vunpack.c.l.bf16 %v575
      %v580 = vsel %vm325, %v578, 0.0
      %581 = vadd.xlane.f32.xlu0 %v580
      %v582 = vpop.xlane.xlu0 %581
      %v583 = vsel %vm325, %v579, 0.0
      %584 = vadd.xlane.f32.xlu0 %v583
      %v585 = vpop.xlane.xlu0 %584
      %v588 = vperm.slane %v582, %v295
      %v589 = vperm.slane %v585, %v295
      %v590 = vsel %vm336, %v589, %v588
      %v592 = vadd.f32 %v577, %v590
      %593 = vst.msk [vmem:[%s576] sm:$0x3] %vm340, %v592
      %v594 = vsub.f32 %v302, -0.5
      %v595 = vsub.f32 %v303, -0.5
      %v596 = vmul.f32 %v594, %v594
      %v597 = vmul.f32 %v595, %v595
      %v598 = vsub.f32 0.0, %v596
      %v599 = vsub.f32 0.0, %v597
      %v600 = vmul.f32 %v598, 50.0
      %v601 = vmul.f32 %v599, 50.0
      %v602 = vpack.c.bf16 %v600, %v600
      %v603 = vpack.c.bf16 %v601, %v601
      %v604 = vunpack.c.l.bf16 %v602
      %v605 = vunpack.c.l.bf16 %v603
      %v606 = vmul.f32 %v604, 1.442695
      %v607 = vpow.pop %v606
      %v608 = vmul.f32 %v605, 1.442695
      %v609 = vpow.pop %v608
      %v610 = vpack.c.bf16 %v607, %v607
      %v611 = vpack.c.bf16 %v609, %v609
      %s612 = scalar_lea.vmem [#allocation2], 16
      %v613 = vld [vmem:[%s612] sm:$0x3]
      %v614 = vunpack.c.l.bf16 %v610
      %v615 = vunpack.c.l.bf16 %v611
      %v616 = vsel %vm325, %v614, 0.0
      %617 = vadd.xlane.f32.xlu0 %v616
      %v618 = vpop.xlane.xlu0 %617
      %v619 = vsel %vm325, %v615, 0.0
      %620 = vadd.xlane.f32.xlu0 %v619
      %v621 = vpop.xlane.xlu0 %620
      %v624 = vperm.slane %v618, %v295
      %v625 = vperm.slane %v621, %v295
      %v626 = vsel %vm336, %v625, %v624
      %v628 = vadd.f32 %v613, %v626
      %629 = vst.msk [vmem:[%s612] sm:$0x3] %vm340, %v628
      %v630 = vsub.f32 %v302, -0.7
      %v631 = vsub.f32 %v303, -0.7
      %v632 = vmul.f32 %v630, %v630
      %v633 = vmul.f32 %v631, %v631
      %v634 = vsub.f32 0.0, %v632
      %v635 = vsub.f32 0.0, %v633
      %v636 = vmul.f32 %v634, 50.0
      %v637 = vmul.f32 %v635, 50.0
      %v638 = vpack.c.bf16 %v636, %v636
      %v639 = vpack.c.bf16 %v637, %v637
      %v640 = vunpack.c.l.bf16 %v638
      %v641 = vunpack.c.l.bf16 %v639
      %v642 = vmul.f32 %v640, 1.442695
      %v643 = vpow.pop %v642
      %v644 = vmul.f32 %v641, 1.442695
      %v645 = vpow.pop %v644
      %v646 = vpack.c.bf16 %v643, %v643
      %v647 = vpack.c.bf16 %v645, %v645
      %s648 = scalar_lea.vmem [#allocation2], 18
      %v649 = vld [vmem:[%s648] sm:$0x3]
      %v650 = vunpack.c.l.bf16 %v646
      %v651 = vunpack.c.l.bf16 %v647
      %v652 = vsel %vm325, %v650, 0.0
      %653 = vadd.xlane.f32.xlu0 %v652
      %v654 = vpop.xlane.xlu0 %653
      %v655 = vsel %vm325, %v651, 0.0
      %656 = vadd.xlane.f32.xlu0 %v655
      %v657 = vpop.xlane.xlu0 %656
      %v660 = vperm.slane %v654, %v295
      %v661 = vperm.slane %v657, %v295
      %v662 = vsel %vm336, %v661, %v660
      %v664 = vadd.f32 %v649, %v662
      %665 = vst.msk [vmem:[%s648] sm:$0x3] %vm340, %v664
      %v666 = vsub.f32 %v302, -0.9
      %v667 = vsub.f32 %v303, -0.9
      %v668 = vmul.f32 %v666, %v666
      %v669 = vmul.f32 %v667, %v667
      %v670 = vsub.f32 0.0, %v668
      %v671 = vsub.f32 0.0, %v669
      %v672 = vmul.f32 %v670, 50.0
      %v673 = vmul.f32 %v671, 50.0
      %v674 = vpack.c.bf16 %v672, %v672
      %v675 = vpack.c.bf16 %v673, %v673
      %v676 = vunpack.c.l.bf16 %v674
      %v677 = vunpack.c.l.bf16 %v675
      %v678 = vmul.f32 %v676, 1.442695
      %v679 = vpow.pop %v678
      %v680 = vmul.f32 %v677, 1.442695
      %v681 = vpow.pop %v680
      %v682 = vpack.c.bf16 %v679, %v679
      %v683 = vpack.c.bf16 %v681, %v681
      %s684 = scalar_lea.vmem [#allocation2], 20
      %v685 = vld [vmem:[%s684] sm:$0x3]
      %v686 = vunpack.c.l.bf16 %v682
      %v687 = vunpack.c.l.bf16 %v683
      %v688 = vsel %vm325, %v686, 0.0
      %689 = vadd.xlane.f32.xlu0 %v688
      %v690 = vpop.xlane.xlu0 %689
      %v691 = vsel %vm325, %v687, 0.0
      %692 = vadd.xlane.f32.xlu0 %v691
      %v693 = vpop.xlane.xlu0 %692
      %v696 = vperm.slane %v690, %v295
      %v697 = vperm.slane %v693, %v295
      %v698 = vsel %vm336, %v697, %v696
      %v700 = vadd.f32 %v685, %v698
      %701 = vst.msk [vmem:[%s684] sm:$0x3] %vm340, %v700
      // Predicated region
      $region33: #{convknrm_forward.5} parent=27 // pred_check
        %p702 = pneg %p231
      $region34: #{convknrm_forward.5} parent=27 // pred_check_branch
        %704 = sbr.rel (%p702) target = $region36
      $region35: #{convknrm_forward.5} parent=27 // pred_region
        %s705 = sld [smem:[#allocation4 + %s38]]
        %s706 = ssub.s32 8, %s705
        %v707 = vstv %s706
        %vm708 = vcmp.lt.s32.totalorder %v295, %v707
        %v709 = vsel %vm708, 1, 0
        %v710 = vcvt.s32.f32 %v709
        %v711 = vld [vmem:[#allocation2] sm:$0x3]
        %v712 = vmax.f32 %v711, 1e-10
        %v713 = vlog2.pop %v712
        %v714 = vmul.f32 %v713, 0.6931472
        %v715 = vmul.f32 %v714, 0.01
        %v716 = vmul.f32 %v715, %v710
        %v717 = vsel %vm340, %v716, 0.0
        %718 = vadd.xlane.f32.xlu0 %v717
        %v719 = vpop.xlane.xlu0 %718
        %vm720 = vcmp.eq.s32.totalorder %v295, 0
        %v721 = vsel %vm720, %v719, 0.0
        %v722 = vld [vmem:[%s360] sm:$0x3]
        %v723 = vmax.f32 %v722, 1e-10
        %v724 = vlog2.pop %v723
        %v725 = vmul.f32 %v724, 0.6931472
        %v726 = vmul.f32 %v725, 0.01
        %v727 = vmul.f32 %v726, %v710
        %v728 = vsel %vm340, %v727, 0.0
        %729 = vadd.xlane.f32.xlu0 %v728
        %v730 = vpop.xlane.xlu0 %729
        %vm731 = vcmp.eq.s32.totalorder %v295, 1
        %v732 = vsel %vm731, %v730, %v721
        %v733 = vld [vmem:[%s396] sm:$0x3]
        %v734 = vmax.f32 %v733, 1e-10
        %v735 = vlog2.pop %v734
        %v736 = vmul.f32 %v735, 0.6931472
        %v737 = vmul.f32 %v736, 0.01
        %v738 = vmul.f32 %v737, %v710
        %v739 = vsel %vm340, %v738, 0.0
        %740 = vadd.xlane.f32.xlu0 %v739
        %v741 = vpop.xlane.xlu0 %740
        %vm742 = vcmp.eq.s32.totalorder %v295, 2
        %v743 = vsel %vm742, %v741, %v732
        %v744 = vld [vmem:[%s432] sm:$0x3]
        %v745 = vmax.f32 %v744, 1e-10
        %v746 = vlog2.pop %v745
        %v747 = vmul.f32 %v746, 0.6931472
        %v748 = vmul.f32 %v747, 0.01
        %v749 = vmul.f32 %v748, %v710
        %v750 = vsel %vm340, %v749, 0.0
        %751 = vadd.xlane.f32.xlu0 %v750
        %v752 = vpop.xlane.xlu0 %751
        %vm753 = vcmp.eq.s32.totalorder %v295, 3
        %v754 = vsel %vm753, %v752, %v743
        %v755 = vld [vmem:[%s468] sm:$0x3]
        %v756 = vmax.f32 %v755, 1e-10
        %v757 = vlog2.pop %v756
        %v758 = vmul.f32 %v757, 0.6931472
        %v759 = vmul.f32 %v758, 0.01
        %v760 = vmul.f32 %v759, %v710
        %v761 = vsel %vm340, %v760, 0.0
        %762 = vadd.xlane.f32.xlu0 %v761
        %v763 = vpop.xlane.xlu0 %762
        %vm764 = vcmp.eq.s32.totalorder %v295, 4
        %v765 = vsel %vm764, %v763, %v754
        %v766 = vld [vmem:[%s504] sm:$0x3]
        %v767 = vmax.f32 %v766, 1e-10
        %v768 = vlog2.pop %v767
        %v769 = vmul.f32 %v768, 0.6931472
        %v770 = vmul.f32 %v769, 0.01
        %v771 = vmul.f32 %v770, %v710
        %v772 = vsel %vm340, %v771, 0.0
        %773 = vadd.xlane.f32.xlu0 %v772
        %v774 = vpop.xlane.xlu0 %773
        %vm775 = vcmp.eq.s32.totalorder %v295, 5
        %v776 = vsel %vm775, %v774, %v765
        %v777 = vld [vmem:[%s540] sm:$0x3]
        %v778 = vmax.f32 %v777, 1e-10
        %v779 = vlog2.pop %v778
        %v780 = vmul.f32 %v779, 0.6931472
        %v781 = vmul.f32 %v780, 0.01
        %v782 = vmul.f32 %v781, %v710
        %v783 = vsel %vm340, %v782, 0.0
        %784 = vadd.xlane.f32.xlu0 %v783
        %v785 = vpop.xlane.xlu0 %784
        %vm786 = vcmp.eq.s32.totalorder %v295, 6
        %v787 = vsel %vm786, %v785, %v776
        %v788 = vld [vmem:[%s576] sm:$0x3]
        %v789 = vmax.f32 %v788, 1e-10
        %v790 = vlog2.pop %v789
        %v791 = vmul.f32 %v790, 0.6931472
        %v792 = vmul.f32 %v791, 0.01
        %v793 = vmul.f32 %v792, %v710
        %v794 = vsel %vm340, %v793, 0.0
        %795 = vadd.xlane.f32.xlu0 %v794
        %v796 = vpop.xlane.xlu0 %795
        %vm797 = vcmp.eq.s32.totalorder %v295, 7
        %v798 = vsel %vm797, %v796, %v787
        %v799 = vld [vmem:[%s612] sm:$0x3]
        %v800 = vmax.f32 %v799, 1e-10
        %v801 = vlog2.pop %v800
        %v802 = vmul.f32 %v801, 0.6931472
        %v803 = vmul.f32 %v802, 0.01
        %v804 = vmul.f32 %v803, %v710
        %v805 = vsel %vm340, %v804, 0.0
        %806 = vadd.xlane.f32.xlu0 %v805
        %v807 = vpop.xlane.xlu0 %806
        %vm808 = vcmp.eq.s32.totalorder %v295, 8
        %v809 = vsel %vm808, %v807, %v798
        %v810 = vld [vmem:[%s648] sm:$0x3]
        %v811 = vmax.f32 %v810, 1e-10
        %v812 = vlog2.pop %v811
        %v813 = vmul.f32 %v812, 0.6931472
        %v814 = vmul.f32 %v813, 0.01
        %v815 = vmul.f32 %v814, %v710
        %v816 = vsel %vm340, %v815, 0.0
        %817 = vadd.xlane.f32.xlu0 %v816
        %v818 = vpop.xlane.xlu0 %817
        %vm819 = vcmp.eq.s32.totalorder %v295, 9
        %v820 = vsel %vm819, %v818, %v809
        %v821 = vld [vmem:[%s684] sm:$0x3]
        %v822 = vmax.f32 %v821, 1e-10
        %v823 = vlog2.pop %v822
        %v824 = vmul.f32 %v823, 0.6931472
        %v825 = vmul.f32 %v824, 0.01
        %v826 = vmul.f32 %v825, %v710
        %v827 = vsel %vm340, %v826, 0.0
        %828 = vadd.xlane.f32.xlu0 %v827
        %v829 = vpop.xlane.xlu0 %828
        %vm830 = vcmp.eq.s32.totalorder %v295, 10
        %v831 = vsel %vm830, %v829, %v820
        %832 = vst [vmem:[%s228] sm:$0x3] %v831
      $region36: #{convknrm_forward.5} parent=27 // pred_fallthru
        _
      %s833 = sld [smem:[#allocation6 + %s38]]
      %p834 = scmp.lt.s32.totalorder %s833, 8
      %s835 = scalar_select %p834, %s833, 8
      %s836 = smul.addr %s835, 2
      %s837 = scalar_lea.vmem %s5, %s836
      // Predicated region
      $region37: #{convknrm_forward.5} parent=27 // pred_check
        %p838 = pneg %p124
      $region38: #{convknrm_forward.5} parent=27 // pred_check_branch
        %840 = sbr.rel (%p838) target = $region40
      $region39: #{convknrm_forward.5} parent=27 // pred_region
        %s841 = sld [smem:[#allocation6 + %s38]]
      $region40: #{convknrm_forward.5} parent=27 // pred_fallthru
        _
    $region28: #{convknrm_forward.5} parent=5 // pred_fallthru
      _
    %p842 = scmp.le.s32.totalorder 2, %s29
    // Predicated region
    $region41: #{convknrm_forward.5} parent=5 // pred_check
      %p843 = pneg %p842
    $region42: #{convknrm_forward.5} parent=5 // pred_check_branch
      %845 = sbr.rel (%p843) target = $region44
    $region43: #{convknrm_forward.5} parent=5 // pred_region
      %s846 = ssub.s32 %s29, 2
      // Predicated region
      $region45: #{convknrm_forward.5} parent=43 // pred_check
        %p847 = pneg %p130
      $region46: #{convknrm_forward.5} parent=43 // pred_check_branch
        %849 = sbr.rel (%p847) target = $region48
      $region47: #{convknrm_forward.5} parent=43 // pred_region
        %s850 = sld [smem:[#allocation6 + %s40]]
        %p851 = scmp.lt.s32.totalorder %s850, 8
        %s852 = scalar_select %p851, %s850, 8
        %s853 = smul.addr %s852, 2
        %s854 = scalar_lea.vmem %s5, %s853
      $region48: #{convknrm_forward.5} parent=43 // pred_fallthru
        _
    $region44: #{convknrm_forward.5} parent=5 // pred_fallthru
      _
  $region6: #{convknrm_forward.5} parent=0 // loop_footer
    %s33 = sadd.s32 1, %s29
  $region7: #{convknrm_forward.5} parent=0 // loop_footer_branch
    %28 = sbr.rel target = $region3
  $region8: #{convknrm_forward.5} parent=0 // loop_exit
    _

</llo_original>
